<compile_context>
chip_gen: v5e
topology: v5e:2x2
jax: 0.10.0
libtpu: 0.0.40
codegen_flags: <defaults>
</compile_context>

<pallas_src>
import functools

import jax
import jax.numpy as jnp
from jax.experimental import pallas as pl
from jax.experimental.pallas import tpu as pltpu


# ----------------------------- fused Pallas kernel -----------------------------

def _ln(x, g, b, eps=1e-5):
    mu = jnp.mean(x, axis=-1, keepdims=True)
    var = jnp.mean(jnp.square(x - mu), axis=-1, keepdims=True)
    return (x - mu) * jax.lax.rsqrt(var + eps) * g + b


def _fused_forward_kernel(
    h0_ref, mask_ref,
    w_attn_ref,        # (L, 4, D, D): [w_q, w_k, w_v, w_proj]
    w_fc_ref,          # (L, D, 4D)
    b_fc_ref,          # (L, 1, 4D)
    w_mp_ref,          # (L, 4D, D)
    vec_ref,           # (L, 9, D): [ln1_g,ln1_b,b_q,b_k,b_v,b_proj,ln2_g,ln2_b,b_mp]
    lnf_ref,           # (2, D): [lnf_g, lnf_b]
    w1b_ref,           # (D+1, HID): w1 with b1 appended as last row
    w2b_ref,           # (HID+1, n_pad): w2 (lane-padded) with b2 as last row
    o_ref,             # (B, n_pad)
    *, B, S, D, H, L, HID):
    Dh = D // H
    scale = 1.0 / (Dh ** 0.5)
    f32 = jnp.float32

    h = h0_ref[...]                       # (B*S, D) token + position embeddings
    m = mask_ref[...]                     # (B, S) float {0, 1}

    # Additive causal + key-padding bias, built once at (H*B, S, S); row h*B+b.
    q_iota = jax.lax.broadcasted_iota(jnp.int32, (S, S), 0)
    k_iota = jax.lax.broadcasted_iota(jnp.int32, (S, S), 1)
    causal = k_iota <= q_iota                              # (S, S)
    keym = jnp.concatenate([m] * H, axis=0)                # (H*B, S)
    # NOTE: fully-padded query rows see an all -1e9 bias row -> uniform softmax
    # over padded keys.  This matches the reference; those rows are zeroed out
    # by the masked-mean pooling, so no NaNs and no output impact.
    bias = jnp.where(causal[None, :, :] & (keym[:, None, :] > 0.5),
                     0.0, -1e9)                            # (H*B, S, S)

    def split_heads(t):
        # (B*S, D) -> (H*B, S, Dh).  Only a clean sublane split (B*S -> B, S),
        # static lane slices and leading-axis stacking; no cross-tile reshapes.
        t3 = t.reshape(B, S, D)
        return jnp.concatenate(
            [t3[:, :, hd * Dh:(hd + 1) * Dh] for hd in range(H)], axis=0)

    for l in range(L):                                     # static unroll
        ln1_g, ln1_b = vec_ref[l, 0:1, :], vec_ref[l, 1:2, :]
        b_q, b_k     = vec_ref[l, 2:3, :], vec_ref[l, 3:4, :]
        b_v, b_prj   = vec_ref[l, 4:5, :], vec_ref[l, 5:6, :]
        ln2_g, ln2_b = vec_ref[l, 6:7, :], vec_ref[l, 7:8, :]
        b_mp         = vec_ref[l, 8:9, :]

        # ---------------- attention sublayer ----------------
        x = _ln(h, ln1_g, ln1_b)
        q = jnp.dot(x, w_attn_ref[l, 0, :, :], preferred_element_type=f32) + b_q
        k = jnp.dot(x, w_attn_ref[l, 1, :, :], preferred_element_type=f32) + b_k
        v = jnp.dot(x, w_attn_ref[l, 2, :, :], preferred_element_type=f32) + b_v

        q3, k3, v3 = split_heads(q), split_heads(k), split_heads(v)   # (H*B,S,Dh)

        # One batched contraction for all B*H heads: q.kT  -> (H*B, S, S)
        s = jax.lax.dot_general(q3, k3, (((2,), (2,)), ((0,), (0,))),
                                preferred_element_type=f32) * scale + bias
        s_max = jnp.max(s, axis=-1, keepdims=True)
        e = jnp.exp(s - s_max)
        # Exact reciprocal (approx=True risks the 1e-3 parity at this scale).
        p = e * pl.reciprocal(jnp.sum(e, axis=-1, keepdims=True))
        # One batched contraction: p.v -> (H*B, S, Dh)
        ctx3 = jax.lax.dot_general(p, v3, (((2,), (1,)), ((0,), (0,))),
                                   preferred_element_type=f32)

        # Heads back onto the lane axis, all in vregs (no VMEM scratch).
        ctx = jnp.concatenate(
            [ctx3[hd * B:(hd + 1) * B] for hd in range(H)], axis=-1
        ).reshape(B * S, D)

        h = h + jnp.dot(ctx, w_attn_ref[l, 3, :, :],
                        preferred_element_type=f32) + b_prj

        # ---------------- MLP sublayer ----------------
        x = _ln(h, ln2_g, ln2_b)
        ff = jnp.dot(x, w_fc_ref[l], preferred_element_type=f32) + b_fc_ref[l]
        ff = jax.nn.gelu(ff, approximate=True)            # GPT-2 gelu_new
        h = h + jnp.dot(ff, w_mp_ref[l], preferred_element_type=f32) + b_mp

    # ------------- final LN + masked mean pool + classifier head -------------
    hf = _ln(h, lnf_ref[0:1, :], lnf_ref[1:2, :])          # (B*S, D)
    hf3 = hf.reshape(B, S, D)

    # One batched contraction replaces the per-batch pooling loop + concat.
    summed = jax.lax.dot_general(m[:, None, :], hf3,
                                 (((2,), (1,)), ((0,), (0,))),
                                 preferred_element_type=f32)        # (B, 1, D)
    lengths = jnp.maximum(jnp.sum(m, axis=-1, keepdims=True), 1e-9)  # (B, 1)
    pooled = summed.reshape(B, D) * pl.reciprocal(lengths)

    # Dropout(p=0.1) is identity at inference.
    z = jnp.dot(pooled, w1b_ref[0:D, :],
                preferred_element_type=f32) + w1b_ref[D:D + 1, :]
    z = jnp.where(z > 0, z, 0.01 * z)                      # LeakyReLU(0.01)
    o_ref[...] = jnp.dot(z, w2b_ref[0:HID, :],
                         preferred_element_type=f32) + w2b_ref[HID:HID + 1, :]


def gpt2_emo_classifier_forward(params, input_ids, attention_mask):
    B, S = input_ids.shape
    D = params["wte"].shape[1]
    H = params["n_head"]
    L = len(params["blocks"])
    HID = params["w1"].shape[1]
    n_classes = params["w2"].shape[1]
    n_pad = ((n_classes + 127) // 128) * 128               # lane-dense output

    # Token + position embedding gather kept as plain-JAX glue.
    h0 = (params["wte"][input_ids]
          + params["wpe"][:S][None, :, :]).reshape(B * S, D).astype(jnp.float32)
    maskf = attention_mask.astype(jnp.float32)

    blocks = params["blocks"]
    stack = lambda name: jnp.stack([blk[name] for blk in blocks])

    # Pre-split fused QKV weight/bias -> lane-dense per-projection matmuls.
    w_qkv = stack("w_qkv")                                 # (L, D, 3D)
    b_qkv = stack("b_qkv")                                 # (L, 1, 3D)
    w_q, w_k, w_v = w_qkv[:, :, :D], w_qkv[:, :, D:2 * D], w_qkv[:, :, 2 * D:]
    b_q, b_k, b_v = b_qkv[:, :, :D], b_qkv[:, :, D:2 * D], b_qkv[:, :, 2 * D:]

    # Packed inputs (10 DMAs instead of 20).
    w_attn = jnp.stack([w_q, w_k, w_v, stack("w_proj")], axis=1)  # (L, 4, D, D)
    w_fc_s = stack("w_fc")                                 # (L, D, 4D)
    b_fc_s = stack("b_fc")                                 # (L, 1, 4D)
    w_mp_s = stack("w_mlp_proj")                           # (L, 4D, D)
    vec_d = jnp.concatenate(
        [stack("ln1_g"), stack("ln1_b"), b_q, b_k, b_v, stack("b_proj"),
         stack("ln2_g"), stack("ln2_b"), stack("b_mlp_proj")], axis=1)  # (L,9,D)
    lnf_gb = jnp.concatenate([params["lnf_g"], params["lnf_b"]], axis=0)  # (2, D)
    w1b = jnp.concatenate([params["w1"], params["b1"]], axis=0)           # (D+1, HID)
    w2p = jnp.zeros((HID, n_pad), jnp.float32).at[:, :n_classes].set(params["w2"])
    b2p = jnp.zeros((1, n_pad), jnp.float32).at[:, :n_classes].set(params["b2"])
    w2b = jnp.concatenate([w2p, b2p], axis=0)                             # (HID+1, n_pad)

    vmem = pl.BlockSpec(memory_space=pltpu.MemorySpace.VMEM)
    kernel = functools.partial(_fused_forward_kernel,
                               B=B, S=S, D=D, H=H, L=L, HID=HID)

    out = pl.pallas_call(
        kernel,
        out_shape=jax.ShapeDtypeStruct((B, n_pad), jnp.float32),
        in_specs=[vmem] * 10,
        out_specs=vmem,
    )(h0, maskf, w_attn, w_fc_s, b_fc_s, w_mp_s, vec_d, lnf_gb, w1b, w2b)

    return out[:, :n_classes]


# ----------------------------- pure-JAX reference -----------------------------

def reference_forward(params, input_ids, attention_mask):
    B, S = input_ids.shape
    D = params["wte"].shape[1]
    H = params["n_head"]
    Dh = D // H

    def ln(x, g, b):
        mu = x.mean(-1, keepdims=True)
        var = ((x - mu) ** 2).mean(-1, keepdims=True)
        return (x - mu) * jax.lax.rsqrt(var + 1e-5) * g + b

    h = params["wte"][input_ids] + params["wpe"][jnp.arange(S)][None]
    causal = jnp.tril(jnp.ones((S, S), jnp.float32))
    allowed = causal[None] * attention_mask.astype(jnp.float32)[:, None, :]
    bias = jnp.where(allowed > 0, 0.0, -1e9)[:, None]        # (B, 1, S, S)

    for blk in params["blocks"]:
        x = ln(h, blk["ln1_g"], blk["ln1_b"])
        qkv = x @ blk["w_qkv"] + blk["b_qkv"]
        q, k, v = jnp.split(qkv, 3, axis=-1)
        sh = lambda t: t.reshape(B, S, H, Dh).transpose(0, 2, 1, 3)
        q, k, v = sh(q), sh(k), sh(v)
        s = jnp.einsum("bhqd,bhkd->bhqk", q, k) / (Dh ** 0.5) + bias
        p = jax.nn.softmax(s, axis=-1)
        a = jnp.einsum("bhqk,bhkd->bhqd", p, v).transpose(0, 2, 1, 3).reshape(B, S, D)
        h = h + a @ blk["w_proj"] + blk["b_proj"]
        x = ln(h, blk["ln2_g"], blk["ln2_b"])
        ff = jax.nn.gelu(x @ blk["w_fc"] + blk["b_fc"], approximate=True)
        h = h + ff @ blk["w_mlp_proj"] + blk["b_mlp_proj"]

    h = ln(h, params["lnf_g"], params["lnf_b"])
    m = attention_mask.astype(jnp.float32)[..., None]
    pooled = (h * m).sum(1) / jnp.maximum(m.sum(1), 1e-9)
    z = pooled @ params["w1"] + params["b1"]
    z = jnp.where(z > 0, z, 0.01 * z)
    return z @ params["w2"] + params["b2"]


# ----------------------------- deterministic init -----------------------------

def init_params(key, vocab, n_pos, D, H, n_layer, n_classes):
    std = 0.02
    keys = jax.random.split(key, 4 + n_layer)
    params = {
        "n_head": H,
        "wte": jax.random.normal(keys[0], (vocab, D), jnp.float32) * std,
        "wpe": jax.random.normal(keys[1], (n_pos, D), jnp.float32) * std,
        "lnf_g": jnp.ones((1, D), jnp.float32),
        "lnf_b": jnp.zeros((1, D), jnp.float32),
    }
    blocks = []
    for i in range(n_layer):
        k = jax.random.split(keys[4 + i], 4)
        blocks.append({
            "ln1_g": jnp.ones((1, D), jnp.float32),
            "ln1_b": jnp.zeros((1, D), jnp.float32),
            "w_qkv": jax.random.normal(k[0], (D, 3 * D), jnp.float32) * std,
            "b_qkv": jnp.zeros((1, 3 * D), jnp.float32),
            "w_proj": jax.random.normal(k[1], (D, D), jnp.float32) * std,
            "b_proj": jnp.zeros((1, D), jnp.float32),
            "ln2_g": jnp.ones((1, D), jnp.float32),
            "ln2_b": jnp.zeros((1, D), jnp.float32),
            "w_fc": jax.random.normal(k[2], (D, 4 * D), jnp.float32) * std,
            "b_fc": jnp.zeros((1, 4 * D), jnp.float32),
            "w_mlp_proj": jax.random.normal(k[3], (4 * D, D), jnp.float32) * std,
            "b_mlp_proj": jnp.zeros((1, D), jnp.float32),
        })
    params["blocks"] = blocks
    kc = jax.random.split(keys[2], 2)
    params["w1"] = jax.random.normal(kc[0], (D, 256), jnp.float32) * (1.0 / D ** 0.5)
    params["b1"] = jnp.zeros((1, 256), jnp.float32)
    params["w2"] = jax.random.normal(kc[1], (256, n_classes), jnp.float32) * (1.0 / 256 ** 0.5)
    params["b2"] = jnp.zeros((1, n_classes), jnp.float32)
    return params


# ----------------------------- main -----------------------------

if __name__ == "__main__":
    B, S = 2, 8
    VOCAB, N_POS, D, H, N_LAYER, N_CLASSES = 50, 16, 32, 2, 2, 28

    key = jax.random.PRNGKey(0)
    kp, kids = jax.random.split(key)
    params = init_params(kp, VOCAB, N_POS, D, H, N_LAYER, N_CLASSES)

    input_ids = jax.random.randint(kids, (B, S), 0, VOCAB, dtype=jnp.int32)
    attention_mask = jnp.array([[1, 1, 1, 1, 1, 0, 0, 0],
                                [1, 1, 1, 1, 1, 1, 1, 1]], dtype=jnp.int32)

    logits = gpt2_emo_classifier_forward(params, input_ids, attention_mask)
    logits = jax.block_until_ready(logits)

    ref = reference_forward(params, input_ids, attention_mask)
    assert logits.shape == (B, N_CLASSES)
    assert jnp.allclose(logits, ref, atol=1e-3, rtol=1e-3)

    print("KERNEL_OK")
</pallas_src>

<mosaic_0001>
module attributes {stable_mosaic.version = 11 : i64} {
  func.func @_fused_forward_kernel(%arg0: memref<16x32xf32, #tpu.memory_space<vmem>>, %arg1: memref<2x8xf32, #tpu.memory_space<vmem>>, %arg2: memref<2x4x32x32xf32, #tpu.memory_space<vmem>>, %arg3: memref<2x32x128xf32, #tpu.memory_space<vmem>>, %arg4: memref<2x1x128xf32, #tpu.memory_space<vmem>>, %arg5: memref<2x128x32xf32, #tpu.memory_space<vmem>>, %arg6: memref<2x9x32xf32, #tpu.memory_space<vmem>>, %arg7: memref<2x32xf32, #tpu.memory_space<vmem>>, %arg8: memref<33x256xf32, #tpu.memory_space<vmem>>, %arg9: memref<257x128xf32, #tpu.memory_space<vmem>>, %arg10: memref<2x128xf32, #tpu.memory_space<vmem>>) attributes {dimension_semantics = [], scalar_prefetch = 0 : i64, scratch_operands = 0 : i64, tpu.core_type = #tpu.core_type<tc>} {
    %c0 = arith.constant 0 : index
    %c0_0 = arith.constant 0 : index
    %0 = vector.load %arg0[%c0, %c0_0] : memref<16x32xf32, #tpu.memory_space<vmem>>, vector<16x32xf32>
    %c0_1 = arith.constant 0 : index
    %c0_2 = arith.constant 0 : index
    %1 = vector.load %arg1[%c0_1, %c0_2] : memref<2x8xf32, #tpu.memory_space<vmem>>, vector<2x8xf32>
    %2 = tpu.iota {dimensions = array<i32: 0>} : vector<8x8xi32>
    %3 = tpu.iota {dimensions = array<i32: 1>} : vector<8x8xi32>
    %4 = arith.cmpi sle, %3, %2 : vector<8x8xi32>
    %5 = tpu.concatenate %1, %1 in 0 : vector<2x8xf32>, vector<2x8xf32> -> vector<4x8xf32>
    %6 = vector.shape_cast %4 : vector<8x8xi1> to vector<1x8x8xi1>
    %7 = vector.shape_cast %5 : vector<4x8xf32> to vector<4x1x8xf32>
    %cst = arith.constant 5.000000e-01 : f32
    %8 = vector.broadcast %cst : f32 to vector<4x1x8xf32>
    %9 = arith.cmpf ogt, %7, %8 : vector<4x1x8xf32>
    %10 = vector.broadcast %6 : vector<1x8x8xi1> to vector<4x8x8xi1>
    %11 = vector.broadcast %9 : vector<4x1x8xi1> to vector<4x8x8xi1>
    %12 = arith.andi %10, %11 : vector<4x8x8xi1>
    %cst_3 = arith.constant 0.000000e+00 : f32
    %cst_4 = arith.constant -1.000000e+09 : f32
    %13 = vector.broadcast %cst_3 : f32 to vector<4x8x8xf32>
    %14 = vector.broadcast %cst_4 : f32 to vector<4x8x8xf32>
    %15 = arith.select %12, %13, %14 : vector<4x8x8xi1>, vector<4x8x8xf32>
    %c0_5 = arith.constant 0 : index
    %c0_6 = arith.constant 0 : index
    %c0_7 = arith.constant 0 : index
    %16 = vector.load %arg6[%c0_5, %c0_6, %c0_7] : memref<2x9x32xf32, #tpu.memory_space<vmem>>, vector<1x1x32xf32>
    %17 = vector.shape_cast %16 : vector<1x1x32xf32> to vector<1x32xf32>
    %c0_8 = arith.constant 0 : index
    %c1 = arith.constant 1 : index
    %c0_9 = arith.constant 0 : index
    %18 = vector.load %arg6[%c0_8, %c1, %c0_9] : memref<2x9x32xf32, #tpu.memory_space<vmem>>, vector<1x1x32xf32>
    %19 = vector.shape_cast %18 : vector<1x1x32xf32> to vector<1x32xf32>
    %c0_10 = arith.constant 0 : index
    %c2 = arith.constant 2 : index
    %c0_11 = arith.constant 0 : index
    %20 = vector.load %arg6[%c0_10, %c2, %c0_11] : memref<2x9x32xf32, #tpu.memory_space<vmem>>, vector<1x1x32xf32>
    %21 = vector.shape_cast %20 : vector<1x1x32xf32> to vector<1x32xf32>
    %c0_12 = arith.constant 0 : index
    %c3 = arith.constant 3 : index
    %c0_13 = arith.constant 0 : index
    %22 = vector.load %arg6[%c0_12, %c3, %c0_13] : memref<2x9x32xf32, #tpu.memory_space<vmem>>, vector<1x1x32xf32>
    %23 = vector.shape_cast %22 : vector<1x1x32xf32> to vector<1x32xf32>
    %c0_14 = arith.constant 0 : index
    %c4 = arith.constant 4 : index
    %c0_15 = arith.constant 0 : index
    %24 = vector.load %arg6[%c0_14, %c4, %c0_15] : memref<2x9x32xf32, #tpu.memory_space<vmem>>, vector<1x1x32xf32>
    %25 = vector.shape_cast %24 : vector<1x1x32xf32> to vector<1x32xf32>
    %c0_16 = arith.constant 0 : index
    %c5 = arith.constant 5 : index
    %c0_17 = arith.constant 0 : index
    %26 = vector.load %arg6[%c0_16, %c5, %c0_17] : memref<2x9x32xf32, #tpu.memory_space<vmem>>, vector<1x1x32xf32>
    %27 = vector.shape_cast %26 : vector<1x1x32xf32> to vector<1x32xf32>
    %c0_18 = arith.constant 0 : index
    %c6 = arith.constant 6 : index
    %c0_19 = arith.constant 0 : index
    %28 = vector.load %arg6[%c0_18, %c6, %c0_19] : memref<2x9x32xf32, #tpu.memory_space<vmem>>, vector<1x1x32xf32>
    %29 = vector.shape_cast %28 : vector<1x1x32xf32> to vector<1x32xf32>
    %c0_20 = arith.constant 0 : index
    %c7 = arith.constant 7 : index
    %c0_21 = arith.constant 0 : index
    %30 = vector.load %arg6[%c0_20, %c7, %c0_21] : memref<2x9x32xf32, #tpu.memory_space<vmem>>, vector<1x1x32xf32>
    %31 = vector.shape_cast %30 : vector<1x1x32xf32> to vector<1x32xf32>
    %c0_22 = arith.constant 0 : index
    %c8 = arith.constant 8 : index
    %c0_23 = arith.constant 0 : index
    %32 = vector.load %arg6[%c0_22, %c8, %c0_23] : memref<2x9x32xf32, #tpu.memory_space<vmem>>, vector<1x1x32xf32>
    %33 = vector.shape_cast %32 : vector<1x1x32xf32> to vector<1x32xf32>
    %cst_24 = arith.constant dense<0.000000e+00> : vector<16xf32>
    %34 = vector.multi_reduction <add>, %0, %cst_24 [1] : vector<16x32xf32> to vector<16xf32>
    %35 = vector.shape_cast %34 : vector<16xf32> to vector<16x1xf32>
    %cst_25 = arith.constant 3.200000e+01 : f32
    %36 = vector.broadcast %cst_25 : f32 to vector<16x1xf32>
    %37 = arith.divf %35, %36 : vector<16x1xf32>
    %38 = vector.broadcast %37 : vector<16x1xf32> to vector<16x32xf32>
    %39 = arith.subf %0, %38 : vector<16x32xf32>
    %40 = arith.mulf %39, %39 : vector<16x32xf32>
    %cst_26 = arith.constant dense<0.000000e+00> : vector<16xf32>
    %41 = vector.multi_reduction <add>, %40, %cst_26 [1] : vector<16x32xf32> to vector<16xf32>
    %42 = vector.shape_cast %41 : vector<16xf32> to vector<16x1xf32>
    %cst_27 = arith.constant 3.200000e+01 : f32
    %43 = vector.broadcast %cst_27 : f32 to vector<16x1xf32>
    %44 = arith.divf %42, %43 : vector<16x1xf32>
    %45 = vector.broadcast %37 : vector<16x1xf32> to vector<16x32xf32>
    %46 = arith.subf %0, %45 : vector<16x32xf32>
    %cst_28 = arith.constant 9.99999974E-6 : f32
    %47 = vector.broadcast %cst_28 : f32 to vector<16x1xf32>
    %48 = arith.addf %44, %47 : vector<16x1xf32>
    %49 = math.rsqrt %48 : vector<16x1xf32>
    %50 = vector.broadcast %49 : vector<16x1xf32> to vector<16x32xf32>
    %51 = arith.mulf %46, %50 : vector<16x32xf32>
    %52 = vector.broadcast %17 : vector<1x32xf32> to vector<16x32xf32>
    %53 = arith.mulf %51, %52 : vector<16x32xf32>
    %54 = vector.broadcast %19 : vector<1x32xf32> to vector<16x32xf32>
    %55 = arith.addf %53, %54 : vector<16x32xf32>
    %c0_29 = arith.constant 0 : index
    %c0_30 = arith.constant 0 : index
    %c0_31 = arith.constant 0 : index
    %c0_32 = arith.constant 0 : index
    %56 = vector.load %arg2[%c0_29, %c0_30, %c0_31, %c0_32] : memref<2x4x32x32xf32, #tpu.memory_space<vmem>>, vector<1x1x32x32xf32>
    %57 = vector.shape_cast %56 : vector<1x1x32x32xf32> to vector<32x32xf32>
    %cst_33 = arith.constant dense<0.000000e+00> : vector<16x32xf32>
    %58 = tpu.matmul %55, %57, %cst_33 {dimension_numbers = #tpu.dot_dimension_numbers<[1], [0], [0], [1], [0, 0, 1, 1], [], []>} : vector<16x32xf32>, vector<32x32xf32>, vector<16x32xf32> -> vector<16x32xf32>
    %59 = vector.broadcast %21 : vector<1x32xf32> to vector<16x32xf32>
    %60 = arith.addf %58, %59 : vector<16x32xf32>
    %c0_34 = arith.constant 0 : index
    %c1_35 = arith.constant 1 : index
    %c0_36 = arith.constant 0 : index
    %c0_37 = arith.constant 0 : index
    %61 = vector.load %arg2[%c0_34, %c1_35, %c0_36, %c0_37] : memref<2x4x32x32xf32, #tpu.memory_space<vmem>>, vector<1x1x32x32xf32>
    %62 = vector.shape_cast %61 : vector<1x1x32x32xf32> to vector<32x32xf32>
    %cst_38 = arith.constant dense<0.000000e+00> : vector<16x32xf32>
    %63 = tpu.matmul %55, %62, %cst_38 {dimension_numbers = #tpu.dot_dimension_numbers<[1], [0], [0], [1], [0, 0, 1, 1], [], []>} : vector<16x32xf32>, vector<32x32xf32>, vector<16x32xf32> -> vector<16x32xf32>
    %64 = vector.broadcast %23 : vector<1x32xf32> to vector<16x32xf32>
    %65 = arith.addf %63, %64 : vector<16x32xf32>
    %c0_39 = arith.constant 0 : index
    %c2_40 = arith.constant 2 : index
    %c0_41 = arith.constant 0 : index
    %c0_42 = arith.constant 0 : index
    %66 = vector.load %arg2[%c0_39, %c2_40, %c0_41, %c0_42] : memref<2x4x32x32xf32, #tpu.memory_space<vmem>>, vector<1x1x32x32xf32>
    %67 = vector.shape_cast %66 : vector<1x1x32x32xf32> to vector<32x32xf32>
    %cst_43 = arith.constant dense<0.000000e+00> : vector<16x32xf32>
    %68 = tpu.matmul %55, %67, %cst_43 {dimension_numbers = #tpu.dot_dimension_numbers<[1], [0], [0], [1], [0, 0, 1, 1], [], []>} : vector<16x32xf32>, vector<32x32xf32>, vector<16x32xf32> -> vector<16x32xf32>
    %69 = vector.broadcast %25 : vector<1x32xf32> to vector<16x32xf32>
    %70 = arith.addf %68, %69 : vector<16x32xf32>
    %71 = vector.shape_cast %60 : vector<16x32xf32> to vector<2x8x32xf32>
    %72 = vector.extract_strided_slice %71 {offsets = [0, 0, 0], sizes = [2, 8, 16], strides = [1, 1, 1]} : vector<2x8x32xf32> to vector<2x8x16xf32>
    %73 = vector.extract_strided_slice %71 {offsets = [0, 0, 16], sizes = [2, 8, 16], strides = [1, 1, 1]} : vector<2x8x32xf32> to vector<2x8x16xf32>
    %74 = tpu.concatenate %72, %73 in 0 : vector<2x8x16xf32>, vector<2x8x16xf32> -> vector<4x8x16xf32>
    %75 = vector.shape_cast %65 : vector<16x32xf32> to vector<2x8x32xf32>
    %76 = vector.extract_strided_slice %75 {offsets = [0, 0, 0], sizes = [2, 8, 16], strides = [1, 1, 1]} : vector<2x8x32xf32> to vector<2x8x16xf32>
    %77 = vector.extract_strided_slice %75 {offsets = [0, 0, 16], sizes = [2, 8, 16], strides = [1, 1, 1]} : vector<2x8x32xf32> to vector<2x8x16xf32>
    %78 = tpu.concatenate %76, %77 in 0 : vector<2x8x16xf32>, vector<2x8x16xf32> -> vector<4x8x16xf32>
    %79 = vector.shape_cast %70 : vector<16x32xf32> to vector<2x8x32xf32>
    %80 = vector.extract_strided_slice %79 {offsets = [0, 0, 0], sizes = [2, 8, 16], strides = [1, 1, 1]} : vector<2x8x32xf32> to vector<2x8x16xf32>
    %81 = vector.extract_strided_slice %79 {offsets = [0, 0, 16], sizes = [2, 8, 16], strides = [1, 1, 1]} : vector<2x8x32xf32> to vector<2x8x16xf32>
    %82 = tpu.concatenate %80, %81 in 0 : vector<2x8x16xf32>, vector<2x8x16xf32> -> vector<4x8x16xf32>
    %cst_44 = arith.constant dense<0.000000e+00> : vector<4x8x8xf32>
    %83 = tpu.matmul %74, %78, %cst_44 {dimension_numbers = #tpu.dot_dimension_numbers<[2], [2], [1], [1], [0, 0, 0, 1, 1, 1], [0], [0]>} : vector<4x8x16xf32>, vector<4x8x16xf32>, vector<4x8x8xf32> -> vector<4x8x8xf32>
    %cst_45 = arith.constant 2.500000e-01 : f32
    %84 = vector.broadcast %cst_45 : f32 to vector<4x8x8xf32>
    %85 = arith.mulf %83, %84 : vector<4x8x8xf32>
    %86 = arith.addf %85, %15 : vector<4x8x8xf32>
    %cst_46 = arith.constant dense<0xFF800000> : vector<4x8xf32>
    %87 = vector.multi_reduction <maximumf>, %86, %cst_46 [2] : vector<4x8x8xf32> to vector<4x8xf32>
    %88 = vector.shape_cast %87 : vector<4x8xf32> to vector<4x8x1xf32>
    %89 = vector.broadcast %88 : vector<4x8x1xf32> to vector<4x8x8xf32>
    %90 = arith.subf %86, %89 : vector<4x8x8xf32>
    %91 = math.exp %90 : vector<4x8x8xf32>
    %cst_47 = arith.constant dense<0.000000e+00> : vector<4x8xf32>
    %92 = vector.multi_reduction <add>, %91, %cst_47 [2] : vector<4x8x8xf32> to vector<4x8xf32>
    %93 = vector.shape_cast %92 : vector<4x8xf32> to vector<4x8x1xf32>
    %94 = tpu.reciprocal %93 : vector<4x8x1xf32> -> vector<4x8x1xf32>
    %95 = vector.broadcast %94 : vector<4x8x1xf32> to vector<4x8x8xf32>
    %96 = arith.mulf %91, %95 : vector<4x8x8xf32>
    %cst_48 = arith.constant dense<0.000000e+00> : vector<4x8x16xf32>
    %97 = tpu.matmul %96, %82, %cst_48 {dimension_numbers = #tpu.dot_dimension_numbers<[2], [1], [1], [2], [0, 0, 0, 1, 1, 2], [0], [0]>} : vector<4x8x8xf32>, vector<4x8x16xf32>, vector<4x8x16xf32> -> vector<4x8x16xf32>
    %98 = vector.extract_strided_slice %97 {offsets = [0, 0, 0], sizes = [2, 8, 16], strides = [1, 1, 1]} : vector<4x8x16xf32> to vector<2x8x16xf32>
    %99 = vector.extract_strided_slice %97 {offsets = [2, 0, 0], sizes = [2, 8, 16], strides = [1, 1, 1]} : vector<4x8x16xf32> to vector<2x8x16xf32>
    %100 = tpu.concatenate %98, %99 in 2 : vector<2x8x16xf32>, vector<2x8x16xf32> -> vector<2x8x32xf32>
    %101 = vector.shape_cast %100 : vector<2x8x32xf32> to vector<16x32xf32>
    %c0_49 = arith.constant 0 : index
    %c3_50 = arith.constant 3 : index
    %c0_51 = arith.constant 0 : index
    %c0_52 = arith.constant 0 : index
    %102 = vector.load %arg2[%c0_49, %c3_50, %c0_51, %c0_52] : memref<2x4x32x32xf32, #tpu.memory_space<vmem>>, vector<1x1x32x32xf32>
    %103 = vector.shape_cast %102 : vector<1x1x32x32xf32> to vector<32x32xf32>
    %cst_53 = arith.constant dense<0.000000e+00> : vector<16x32xf32>
    %104 = tpu.matmul %101, %103, %cst_53 {dimension_numbers = #tpu.dot_dimension_numbers<[1], [0], [0], [1], [0, 0, 1, 1], [], []>} : vector<16x32xf32>, vector<32x32xf32>, vector<16x32xf32> -> vector<16x32xf32>
    %105 = arith.addf %0, %104 : vector<16x32xf32>
    %106 = vector.broadcast %27 : vector<1x32xf32> to vector<16x32xf32>
    %107 = arith.addf %105, %106 : vector<16x32xf32>
    %cst_54 = arith.constant dense<0.000000e+00> : vector<16xf32>
    %108 = vector.multi_reduction <add>, %107, %cst_54 [1] : vector<16x32xf32> to vector<16xf32>
    %109 = vector.shape_cast %108 : vector<16xf32> to vector<16x1xf32>
    %cst_55 = arith.constant 3.200000e+01 : f32
    %110 = vector.broadcast %cst_55 : f32 to vector<16x1xf32>
    %111 = arith.divf %109, %110 : vector<16x1xf32>
    %112 = vector.broadcast %111 : vector<16x1xf32> to vector<16x32xf32>
    %113 = arith.subf %107, %112 : vector<16x32xf32>
    %114 = arith.mulf %113, %113 : vector<16x32xf32>
    %cst_56 = arith.constant dense<0.000000e+00> : vector<16xf32>
    %115 = vector.multi_reduction <add>, %114, %cst_56 [1] : vector<16x32xf32> to vector<16xf32>
    %116 = vector.shape_cast %115 : vector<16xf32> to vector<16x1xf32>
    %cst_57 = arith.constant 3.200000e+01 : f32
    %117 = vector.broadcast %cst_57 : f32 to vector<16x1xf32>
    %118 = arith.divf %116, %117 : vector<16x1xf32>
    %119 = vector.broadcast %111 : vector<16x1xf32> to vector<16x32xf32>
    %120 = arith.subf %107, %119 : vector<16x32xf32>
    %cst_58 = arith.constant 9.99999974E-6 : f32
    %121 = vector.broadcast %cst_58 : f32 to vector<16x1xf32>
    %122 = arith.addf %118, %121 : vector<16x1xf32>
    %123 = math.rsqrt %122 : vector<16x1xf32>
    %124 = vector.broadcast %123 : vector<16x1xf32> to vector<16x32xf32>
    %125 = arith.mulf %120, %124 : vector<16x32xf32>
    %126 = vector.broadcast %29 : vector<1x32xf32> to vector<16x32xf32>
    %127 = arith.mulf %125, %126 : vector<16x32xf32>
    %128 = vector.broadcast %31 : vector<1x32xf32> to vector<16x32xf32>
    %129 = arith.addf %127, %128 : vector<16x32xf32>
    %c0_59 = arith.constant 0 : index
    %c0_60 = arith.constant 0 : index
    %c0_61 = arith.constant 0 : index
    %130 = vector.load %arg3[%c0_59, %c0_60, %c0_61] : memref<2x32x128xf32, #tpu.memory_space<vmem>>, vector<1x32x128xf32>
    %131 = vector.shape_cast %130 : vector<1x32x128xf32> to vector<32x128xf32>
    %cst_62 = arith.constant dense<0.000000e+00> : vector<16x128xf32>
    %132 = tpu.matmul %129, %131, %cst_62 {dimension_numbers = #tpu.dot_dimension_numbers<[1], [0], [0], [1], [0, 0, 1, 1], [], []>} : vector<16x32xf32>, vector<32x128xf32>, vector<16x128xf32> -> vector<16x128xf32>
    %c0_63 = arith.constant 0 : index
    %c0_64 = arith.constant 0 : index
    %c0_65 = arith.constant 0 : index
    %133 = vector.load %arg4[%c0_63, %c0_64, %c0_65] : memref<2x1x128xf32, #tpu.memory_space<vmem>>, vector<1x1x128xf32>
    %134 = vector.shape_cast %133 : vector<1x1x128xf32> to vector<1x128xf32>
    %135 = vector.broadcast %134 : vector<1x128xf32> to vector<16x128xf32>
    %136 = arith.addf %132, %135 : vector<16x128xf32>
    %137 = arith.mulf %136, %136 : vector<16x128xf32>
    %138 = arith.mulf %136, %137 : vector<16x128xf32>
    %cst_66 = arith.constant 4.471500e-02 : f32
    %139 = vector.broadcast %cst_66 : f32 to vector<16x128xf32>
    %140 = arith.mulf %139, %138 : vector<16x128xf32>
    %141 = arith.addf %136, %140 : vector<16x128xf32>
    %cst_67 = arith.constant 0.797884583 : f32
    %142 = vector.broadcast %cst_67 : f32 to vector<16x128xf32>
    %143 = arith.mulf %142, %141 : vector<16x128xf32>
    %144 = math.tanh %143 : vector<16x128xf32>
    %cst_68 = arith.constant 1.000000e+00 : f32
    %145 = vector.broadcast %cst_68 : f32 to vector<16x128xf32>
    %146 = arith.addf %145, %144 : vector<16x128xf32>
    %cst_69 = arith.constant 5.000000e-01 : f32
    %147 = vector.broadcast %cst_69 : f32 to vector<16x128xf32>
    %148 = arith.mulf %147, %146 : vector<16x128xf32>
    %149 = arith.mulf %136, %148 : vector<16x128xf32>
    %c0_70 = arith.constant 0 : index
    %c0_71 = arith.constant 0 : index
    %c0_72 = arith.constant 0 : index
    %150 = vector.load %arg5[%c0_70, %c0_71, %c0_72] : memref<2x128x32xf32, #tpu.memory_space<vmem>>, vector<1x128x32xf32>
    %151 = vector.shape_cast %150 : vector<1x128x32xf32> to vector<128x32xf32>
    %cst_73 = arith.constant dense<0.000000e+00> : vector<16x32xf32>
    %152 = tpu.matmul %149, %151, %cst_73 {dimension_numbers = #tpu.dot_dimension_numbers<[1], [0], [0], [1], [0, 0, 1, 1], [], []>} : vector<16x128xf32>, vector<128x32xf32>, vector<16x32xf32> -> vector<16x32xf32>
    %153 = arith.addf %107, %152 : vector<16x32xf32>
    %154 = vector.broadcast %33 : vector<1x32xf32> to vector<16x32xf32>
    %155 = arith.addf %153, %154 : vector<16x32xf32>
    %c1_74 = arith.constant 1 : index
    %c0_75 = arith.constant 0 : index
    %c0_76 = arith.constant 0 : index
    %156 = vector.load %arg6[%c1_74, %c0_75, %c0_76] : memref<2x9x32xf32, #tpu.memory_space<vmem>>, vector<1x1x32xf32>
    %157 = vector.shape_cast %156 : vector<1x1x32xf32> to vector<1x32xf32>
    %c1_77 = arith.constant 1 : index
    %c1_78 = arith.constant 1 : index
    %c0_79 = arith.constant 0 : index
    %158 = vector.load %arg6[%c1_77, %c1_78, %c0_79] : memref<2x9x32xf32, #tpu.memory_space<vmem>>, vector<1x1x32xf32>
    %159 = vector.shape_cast %158 : vector<1x1x32xf32> to vector<1x32xf32>
    %c1_80 = arith.constant 1 : index
    %c2_81 = arith.constant 2 : index
    %c0_82 = arith.constant 0 : index
    %160 = vector.load %arg6[%c1_80, %c2_81, %c0_82] : memref<2x9x32xf32, #tpu.memory_space<vmem>>, vector<1x1x32xf32>
    %161 = vector.shape_cast %160 : vector<1x1x32xf32> to vector<1x32xf32>
    %c1_83 = arith.constant 1 : index
    %c3_84 = arith.constant 3 : index
    %c0_85 = arith.constant 0 : index
    %162 = vector.load %arg6[%c1_83, %c3_84, %c0_85] : memref<2x9x32xf32, #tpu.memory_space<vmem>>, vector<1x1x32xf32>
    %163 = vector.shape_cast %162 : vector<1x1x32xf32> to vector<1x32xf32>
    %c1_86 = arith.constant 1 : index
    %c4_87 = arith.constant 4 : index
    %c0_88 = arith.constant 0 : index
    %164 = vector.load %arg6[%c1_86, %c4_87, %c0_88] : memref<2x9x32xf32, #tpu.memory_space<vmem>>, vector<1x1x32xf32>
    %165 = vector.shape_cast %164 : vector<1x1x32xf32> to vector<1x32xf32>
    %c1_89 = arith.constant 1 : index
    %c5_90 = arith.constant 5 : index
    %c0_91 = arith.constant 0 : index
    %166 = vector.load %arg6[%c1_89, %c5_90, %c0_91] : memref<2x9x32xf32, #tpu.memory_space<vmem>>, vector<1x1x32xf32>
    %167 = vector.shape_cast %166 : vector<1x1x32xf32> to vector<1x32xf32>
    %c1_92 = arith.constant 1 : index
    %c6_93 = arith.constant 6 : index
    %c0_94 = arith.constant 0 : index
    %168 = vector.load %arg6[%c1_92, %c6_93, %c0_94] : memref<2x9x32xf32, #tpu.memory_space<vmem>>, vector<1x1x32xf32>
    %169 = vector.shape_cast %168 : vector<1x1x32xf32> to vector<1x32xf32>
    %c1_95 = arith.constant 1 : index
    %c7_96 = arith.constant 7 : index
    %c0_97 = arith.constant 0 : index
    %170 = vector.load %arg6[%c1_95, %c7_96, %c0_97] : memref<2x9x32xf32, #tpu.memory_space<vmem>>, vector<1x1x32xf32>
    %171 = vector.shape_cast %170 : vector<1x1x32xf32> to vector<1x32xf32>
    %c1_98 = arith.constant 1 : index
    %c8_99 = arith.constant 8 : index
    %c0_100 = arith.constant 0 : index
    %172 = vector.load %arg6[%c1_98, %c8_99, %c0_100] : memref<2x9x32xf32, #tpu.memory_space<vmem>>, vector<1x1x32xf32>
    %173 = vector.shape_cast %172 : vector<1x1x32xf32> to vector<1x32xf32>
    %cst_101 = arith.constant dense<0.000000e+00> : vector<16xf32>
    %174 = vector.multi_reduction <add>, %155, %cst_101 [1] : vector<16x32xf32> to vector<16xf32>
    %175 = vector.shape_cast %174 : vector<16xf32> to vector<16x1xf32>
    %cst_102 = arith.constant 3.200000e+01 : f32
    %176 = vector.broadcast %cst_102 : f32 to vector<16x1xf32>
    %177 = arith.divf %175, %176 : vector<16x1xf32>
    %178 = vector.broadcast %177 : vector<16x1xf32> to vector<16x32xf32>
    %179 = arith.subf %155, %178 : vector<16x32xf32>
    %180 = arith.mulf %179, %179 : vector<16x32xf32>
    %cst_103 = arith.constant dense<0.000000e+00> : vector<16xf32>
    %181 = vector.multi_reduction <add>, %180, %cst_103 [1] : vector<16x32xf32> to vector<16xf32>
    %182 = vector.shape_cast %181 : vector<16xf32> to vector<16x1xf32>
    %cst_104 = arith.constant 3.200000e+01 : f32
    %183 = vector.broadcast %cst_104 : f32 to vector<16x1xf32>
    %184 = arith.divf %182, %183 : vector<16x1xf32>
    %185 = vector.broadcast %177 : vector<16x1xf32> to vector<16x32xf32>
    %186 = arith.subf %155, %185 : vector<16x32xf32>
    %cst_105 = arith.constant 9.99999974E-6 : f32
    %187 = vector.broadcast %cst_105 : f32 to vector<16x1xf32>
    %188 = arith.addf %184, %187 : vector<16x1xf32>
    %189 = math.rsqrt %188 : vector<16x1xf32>
    %190 = vector.broadcast %189 : vector<16x1xf32> to vector<16x32xf32>
    %191 = arith.mulf %186, %190 : vector<16x32xf32>
    %192 = vector.broadcast %157 : vector<1x32xf32> to vector<16x32xf32>
    %193 = arith.mulf %191, %192 : vector<16x32xf32>
    %194 = vector.broadcast %159 : vector<1x32xf32> to vector<16x32xf32>
    %195 = arith.addf %193, %194 : vector<16x32xf32>
    %c1_106 = arith.constant 1 : index
    %c0_107 = arith.constant 0 : index
    %c0_108 = arith.constant 0 : index
    %c0_109 = arith.constant 0 : index
    %196 = vector.load %arg2[%c1_106, %c0_107, %c0_108, %c0_109] : memref<2x4x32x32xf32, #tpu.memory_space<vmem>>, vector<1x1x32x32xf32>
    %197 = vector.shape_cast %196 : vector<1x1x32x32xf32> to vector<32x32xf32>
    %cst_110 = arith.constant dense<0.000000e+00> : vector<16x32xf32>
    %198 = tpu.matmul %195, %197, %cst_110 {dimension_numbers = #tpu.dot_dimension_numbers<[1], [0], [0], [1], [0, 0, 1, 1], [], []>} : vector<16x32xf32>, vector<32x32xf32>, vector<16x32xf32> -> vector<16x32xf32>
    %199 = vector.broadcast %161 : vector<1x32xf32> to vector<16x32xf32>
    %200 = arith.addf %198, %199 : vector<16x32xf32>
    %c1_111 = arith.constant 1 : index
    %c1_112 = arith.constant 1 : index
    %c0_113 = arith.constant 0 : index
    %c0_114 = arith.constant 0 : index
    %201 = vector.load %arg2[%c1_111, %c1_112, %c0_113, %c0_114] : memref<2x4x32x32xf32, #tpu.memory_space<vmem>>, vector<1x1x32x32xf32>
    %202 = vector.shape_cast %201 : vector<1x1x32x32xf32> to vector<32x32xf32>
    %cst_115 = arith.constant dense<0.000000e+00> : vector<16x32xf32>
    %203 = tpu.matmul %195, %202, %cst_115 {dimension_numbers = #tpu.dot_dimension_numbers<[1], [0], [0], [1], [0, 0, 1, 1], [], []>} : vector<16x32xf32>, vector<32x32xf32>, vector<16x32xf32> -> vector<16x32xf32>
    %204 = vector.broadcast %163 : vector<1x32xf32> to vector<16x32xf32>
    %205 = arith.addf %203, %204 : vector<16x32xf32>
    %c1_116 = arith.constant 1 : index
    %c2_117 = arith.constant 2 : index
    %c0_118 = arith.constant 0 : index
    %c0_119 = arith.constant 0 : index
    %206 = vector.load %arg2[%c1_116, %c2_117, %c0_118, %c0_119] : memref<2x4x32x32xf32, #tpu.memory_space<vmem>>, vector<1x1x32x32xf32>
    %207 = vector.shape_cast %206 : vector<1x1x32x32xf32> to vector<32x32xf32>
    %cst_120 = arith.constant dense<0.000000e+00> : vector<16x32xf32>
    %208 = tpu.matmul %195, %207, %cst_120 {dimension_numbers = #tpu.dot_dimension_numbers<[1], [0], [0], [1], [0, 0, 1, 1], [], []>} : vector<16x32xf32>, vector<32x32xf32>, vector<16x32xf32> -> vector<16x32xf32>
    %209 = vector.broadcast %165 : vector<1x32xf32> to vector<16x32xf32>
    %210 = arith.addf %208, %209 : vector<16x32xf32>
    %211 = vector.shape_cast %200 : vector<16x32xf32> to vector<2x8x32xf32>
    %212 = vector.extract_strided_slice %211 {offsets = [0, 0, 0], sizes = [2, 8, 16], strides = [1, 1, 1]} : vector<2x8x32xf32> to vector<2x8x16xf32>
    %213 = vector.extract_strided_slice %211 {offsets = [0, 0, 16], sizes = [2, 8, 16], strides = [1, 1, 1]} : vector<2x8x32xf32> to vector<2x8x16xf32>
    %214 = tpu.concatenate %212, %213 in 0 : vector<2x8x16xf32>, vector<2x8x16xf32> -> vector<4x8x16xf32>
    %215 = vector.shape_cast %205 : vector<16x32xf32> to vector<2x8x32xf32>
    %216 = vector.extract_strided_slice %215 {offsets = [0, 0, 0], sizes = [2, 8, 16], strides = [1, 1, 1]} : vector<2x8x32xf32> to vector<2x8x16xf32>
    %217 = vector.extract_strided_slice %215 {offsets = [0, 0, 16], sizes = [2, 8, 16], strides = [1, 1, 1]} : vector<2x8x32xf32> to vector<2x8x16xf32>
    %218 = tpu.concatenate %216, %217 in 0 : vector<2x8x16xf32>, vector<2x8x16xf32> -> vector<4x8x16xf32>
    %219 = vector.shape_cast %210 : vector<16x32xf32> to vector<2x8x32xf32>
    %220 = vector.extract_strided_slice %219 {offsets = [0, 0, 0], sizes = [2, 8, 16], strides = [1, 1, 1]} : vector<2x8x32xf32> to vector<2x8x16xf32>
    %221 = vector.extract_strided_slice %219 {offsets = [0, 0, 16], sizes = [2, 8, 16], strides = [1, 1, 1]} : vector<2x8x32xf32> to vector<2x8x16xf32>
    %222 = tpu.concatenate %220, %221 in 0 : vector<2x8x16xf32>, vector<2x8x16xf32> -> vector<4x8x16xf32>
    %cst_121 = arith.constant dense<0.000000e+00> : vector<4x8x8xf32>
    %223 = tpu.matmul %214, %218, %cst_121 {dimension_numbers = #tpu.dot_dimension_numbers<[2], [2], [1], [1], [0, 0, 0, 1, 1, 1], [0], [0]>} : vector<4x8x16xf32>, vector<4x8x16xf32>, vector<4x8x8xf32> -> vector<4x8x8xf32>
    %cst_122 = arith.constant 2.500000e-01 : f32
    %224 = vector.broadcast %cst_122 : f32 to vector<4x8x8xf32>
    %225 = arith.mulf %223, %224 : vector<4x8x8xf32>
    %226 = arith.addf %225, %15 : vector<4x8x8xf32>
    %cst_123 = arith.constant dense<0xFF800000> : vector<4x8xf32>
    %227 = vector.multi_reduction <maximumf>, %226, %cst_123 [2] : vector<4x8x8xf32> to vector<4x8xf32>
    %228 = vector.shape_cast %227 : vector<4x8xf32> to vector<4x8x1xf32>
    %229 = vector.broadcast %228 : vector<4x8x1xf32> to vector<4x8x8xf32>
    %230 = arith.subf %226, %229 : vector<4x8x8xf32>
    %231 = math.exp %230 : vector<4x8x8xf32>
    %cst_124 = arith.constant dense<0.000000e+00> : vector<4x8xf32>
    %232 = vector.multi_reduction <add>, %231, %cst_124 [2] : vector<4x8x8xf32> to vector<4x8xf32>
    %233 = vector.shape_cast %232 : vector<4x8xf32> to vector<4x8x1xf32>
    %234 = tpu.reciprocal %233 : vector<4x8x1xf32> -> vector<4x8x1xf32>
    %235 = vector.broadcast %234 : vector<4x8x1xf32> to vector<4x8x8xf32>
    %236 = arith.mulf %231, %235 : vector<4x8x8xf32>
    %cst_125 = arith.constant dense<0.000000e+00> : vector<4x8x16xf32>
    %237 = tpu.matmul %236, %222, %cst_125 {dimension_numbers = #tpu.dot_dimension_numbers<[2], [1], [1], [2], [0, 0, 0, 1, 1, 2], [0], [0]>} : vector<4x8x8xf32>, vector<4x8x16xf32>, vector<4x8x16xf32> -> vector<4x8x16xf32>
    %238 = vector.extract_strided_slice %237 {offsets = [0, 0, 0], sizes = [2, 8, 16], strides = [1, 1, 1]} : vector<4x8x16xf32> to vector<2x8x16xf32>
    %239 = vector.extract_strided_slice %237 {offsets = [2, 0, 0], sizes = [2, 8, 16], strides = [1, 1, 1]} : vector<4x8x16xf32> to vector<2x8x16xf32>
    %240 = tpu.concatenate %238, %239 in 2 : vector<2x8x16xf32>, vector<2x8x16xf32> -> vector<2x8x32xf32>
    %241 = vector.shape_cast %240 : vector<2x8x32xf32> to vector<16x32xf32>
    %c1_126 = arith.constant 1 : index
    %c3_127 = arith.constant 3 : index
    %c0_128 = arith.constant 0 : index
    %c0_129 = arith.constant 0 : index
    %242 = vector.load %arg2[%c1_126, %c3_127, %c0_128, %c0_129] : memref<2x4x32x32xf32, #tpu.memory_space<vmem>>, vector<1x1x32x32xf32>
    %243 = vector.shape_cast %242 : vector<1x1x32x32xf32> to vector<32x32xf32>
    %cst_130 = arith.constant dense<0.000000e+00> : vector<16x32xf32>
    %244 = tpu.matmul %241, %243, %cst_130 {dimension_numbers = #tpu.dot_dimension_numbers<[1], [0], [0], [1], [0, 0, 1, 1], [], []>} : vector<16x32xf32>, vector<32x32xf32>, vector<16x32xf32> -> vector<16x32xf32>
    %245 = arith.addf %155, %244 : vector<16x32xf32>
    %246 = vector.broadcast %167 : vector<1x32xf32> to vector<16x32xf32>
    %247 = arith.addf %245, %246 : vector<16x32xf32>
    %cst_131 = arith.constant dense<0.000000e+00> : vector<16xf32>
    %248 = vector.multi_reduction <add>, %247, %cst_131 [1] : vector<16x32xf32> to vector<16xf32>
    %249 = vector.shape_cast %248 : vector<16xf32> to vector<16x1xf32>
    %cst_132 = arith.constant 3.200000e+01 : f32
    %250 = vector.broadcast %cst_132 : f32 to vector<16x1xf32>
    %251 = arith.divf %249, %250 : vector<16x1xf32>
    %252 = vector.broadcast %251 : vector<16x1xf32> to vector<16x32xf32>
    %253 = arith.subf %247, %252 : vector<16x32xf32>
    %254 = arith.mulf %253, %253 : vector<16x32xf32>
    %cst_133 = arith.constant dense<0.000000e+00> : vector<16xf32>
    %255 = vector.multi_reduction <add>, %254, %cst_133 [1] : vector<16x32xf32> to vector<16xf32>
    %256 = vector.shape_cast %255 : vector<16xf32> to vector<16x1xf32>
    %cst_134 = arith.constant 3.200000e+01 : f32
    %257 = vector.broadcast %cst_134 : f32 to vector<16x1xf32>
    %258 = arith.divf %256, %257 : vector<16x1xf32>
    %259 = vector.broadcast %251 : vector<16x1xf32> to vector<16x32xf32>
    %260 = arith.subf %247, %259 : vector<16x32xf32>
    %cst_135 = arith.constant 9.99999974E-6 : f32
    %261 = vector.broadcast %cst_135 : f32 to vector<16x1xf32>
    %262 = arith.addf %258, %261 : vector<16x1xf32>
    %263 = math.rsqrt %262 : vector<16x1xf32>
    %264 = vector.broadcast %263 : vector<16x1xf32> to vector<16x32xf32>
    %265 = arith.mulf %260, %264 : vector<16x32xf32>
    %266 = vector.broadcast %169 : vector<1x32xf32> to vector<16x32xf32>
    %267 = arith.mulf %265, %266 : vector<16x32xf32>
    %268 = vector.broadcast %171 : vector<1x32xf32> to vector<16x32xf32>
    %269 = arith.addf %267, %268 : vector<16x32xf32>
    %c1_136 = arith.constant 1 : index
    %c0_137 = arith.constant 0 : index
    %c0_138 = arith.constant 0 : index
    %270 = vector.load %arg3[%c1_136, %c0_137, %c0_138] : memref<2x32x128xf32, #tpu.memory_space<vmem>>, vector<1x32x128xf32>
    %271 = vector.shape_cast %270 : vector<1x32x128xf32> to vector<32x128xf32>
    %cst_139 = arith.constant dense<0.000000e+00> : vector<16x128xf32>
    %272 = tpu.matmul %269, %271, %cst_139 {dimension_numbers = #tpu.dot_dimension_numbers<[1], [0], [0], [1], [0, 0, 1, 1], [], []>} : vector<16x32xf32>, vector<32x128xf32>, vector<16x128xf32> -> vector<16x128xf32>
    %c1_140 = arith.constant 1 : index
    %c0_141 = arith.constant 0 : index
    %c0_142 = arith.constant 0 : index
    %273 = vector.load %arg4[%c1_140, %c0_141, %c0_142] : memref<2x1x128xf32, #tpu.memory_space<vmem>>, vector<1x1x128xf32>
    %274 = vector.shape_cast %273 : vector<1x1x128xf32> to vector<1x128xf32>
    %275 = vector.broadcast %274 : vector<1x128xf32> to vector<16x128xf32>
    %276 = arith.addf %272, %275 : vector<16x128xf32>
    %277 = arith.mulf %276, %276 : vector<16x128xf32>
    %278 = arith.mulf %276, %277 : vector<16x128xf32>
    %cst_143 = arith.constant 4.471500e-02 : f32
    %279 = vector.broadcast %cst_143 : f32 to vector<16x128xf32>
    %280 = arith.mulf %279, %278 : vector<16x128xf32>
    %281 = arith.addf %276, %280 : vector<16x128xf32>
    %cst_144 = arith.constant 0.797884583 : f32
    %282 = vector.broadcast %cst_144 : f32 to vector<16x128xf32>
    %283 = arith.mulf %282, %281 : vector<16x128xf32>
    %284 = math.tanh %283 : vector<16x128xf32>
    %cst_145 = arith.constant 1.000000e+00 : f32
    %285 = vector.broadcast %cst_145 : f32 to vector<16x128xf32>
    %286 = arith.addf %285, %284 : vector<16x128xf32>
    %cst_146 = arith.constant 5.000000e-01 : f32
    %287 = vector.broadcast %cst_146 : f32 to vector<16x128xf32>
    %288 = arith.mulf %287, %286 : vector<16x128xf32>
    %289 = arith.mulf %276, %288 : vector<16x128xf32>
    %c1_147 = arith.constant 1 : index
    %c0_148 = arith.constant 0 : index
    %c0_149 = arith.constant 0 : index
    %290 = vector.load %arg5[%c1_147, %c0_148, %c0_149] : memref<2x128x32xf32, #tpu.memory_space<vmem>>, vector<1x128x32xf32>
    %291 = vector.shape_cast %290 : vector<1x128x32xf32> to vector<128x32xf32>
    %cst_150 = arith.constant dense<0.000000e+00> : vector<16x32xf32>
    %292 = tpu.matmul %289, %291, %cst_150 {dimension_numbers = #tpu.dot_dimension_numbers<[1], [0], [0], [1], [0, 0, 1, 1], [], []>} : vector<16x128xf32>, vector<128x32xf32>, vector<16x32xf32> -> vector<16x32xf32>
    %293 = arith.addf %247, %292 : vector<16x32xf32>
    %294 = vector.broadcast %173 : vector<1x32xf32> to vector<16x32xf32>
    %295 = arith.addf %293, %294 : vector<16x32xf32>
    %c0_151 = arith.constant 0 : index
    %c0_152 = arith.constant 0 : index
    %296 = vector.load %arg7[%c0_151, %c0_152] : memref<2x32xf32, #tpu.memory_space<vmem>>, vector<1x32xf32>
    %c1_153 = arith.constant 1 : index
    %c0_154 = arith.constant 0 : index
    %297 = vector.load %arg7[%c1_153, %c0_154] : memref<2x32xf32, #tpu.memory_space<vmem>>, vector<1x32xf32>
    %cst_155 = arith.constant dense<0.000000e+00> : vector<16xf32>
    %298 = vector.multi_reduction <add>, %295, %cst_155 [1] : vector<16x32xf32> to vector<16xf32>
    %299 = vector.shape_cast %298 : vector<16xf32> to vector<16x1xf32>
    %cst_156 = arith.constant 3.200000e+01 : f32
    %300 = vector.broadcast %cst_156 : f32 to vector<16x1xf32>
    %301 = arith.divf %299, %300 : vector<16x1xf32>
    %302 = vector.broadcast %301 : vector<16x1xf32> to vector<16x32xf32>
    %303 = arith.subf %295, %302 : vector<16x32xf32>
    %304 = arith.mulf %303, %303 : vector<16x32xf32>
    %cst_157 = arith.constant dense<0.000000e+00> : vector<16xf32>
    %305 = vector.multi_reduction <add>, %304, %cst_157 [1] : vector<16x32xf32> to vector<16xf32>
    %306 = vector.shape_cast %305 : vector<16xf32> to vector<16x1xf32>
    %cst_158 = arith.constant 3.200000e+01 : f32
    %307 = vector.broadcast %cst_158 : f32 to vector<16x1xf32>
    %308 = arith.divf %306, %307 : vector<16x1xf32>
    %309 = vector.broadcast %301 : vector<16x1xf32> to vector<16x32xf32>
    %310 = arith.subf %295, %309 : vector<16x32xf32>
    %cst_159 = arith.constant 9.99999974E-6 : f32
    %311 = vector.broadcast %cst_159 : f32 to vector<16x1xf32>
    %312 = arith.addf %308, %311 : vector<16x1xf32>
    %313 = math.rsqrt %312 : vector<16x1xf32>
    %314 = vector.broadcast %313 : vector<16x1xf32> to vector<16x32xf32>
    %315 = arith.mulf %310, %314 : vector<16x32xf32>
    %316 = vector.broadcast %296 : vector<1x32xf32> to vector<16x32xf32>
    %317 = arith.mulf %315, %316 : vector<16x32xf32>
    %318 = vector.broadcast %297 : vector<1x32xf32> to vector<16x32xf32>
    %319 = arith.addf %317, %318 : vector<16x32xf32>
    %320 = vector.shape_cast %319 : vector<16x32xf32> to vector<2x8x32xf32>
    %321 = vector.shape_cast %1 : vector<2x8xf32> to vector<2x1x8xf32>
    %cst_160 = arith.constant dense<0.000000e+00> : vector<2x1x32xf32>
    %322 = tpu.matmul %321, %320, %cst_160 {dimension_numbers = #tpu.dot_dimension_numbers<[2], [1], [1], [2], [0, 0, 0, 1, 1, 2], [0], [0]>} : vector<2x1x8xf32>, vector<2x8x32xf32>, vector<2x1x32xf32> -> vector<2x1x32xf32>
    %cst_161 = arith.constant dense<0.000000e+00> : vector<2xf32>
    %323 = vector.multi_reduction <add>, %1, %cst_161 [1] : vector<2x8xf32> to vector<2xf32>
    %324 = vector.shape_cast %323 : vector<2xf32> to vector<2x1xf32>
    %cst_162 = arith.constant 9.99999971E-10 : f32
    %325 = vector.broadcast %cst_162 : f32 to vector<2x1xf32>
    %326 = arith.maximumf %324, %325 : vector<2x1xf32>
    %327 = vector.shape_cast %322 : vector<2x1x32xf32> to vector<2x32xf32>
    %328 = tpu.reciprocal %326 : vector<2x1xf32> -> vector<2x1xf32>
    %329 = vector.broadcast %328 : vector<2x1xf32> to vector<2x32xf32>
    %330 = arith.mulf %327, %329 : vector<2x32xf32>
    %c0_163 = arith.constant 0 : index
    %c0_164 = arith.constant 0 : index
    %331 = vector.load %arg8[%c0_163, %c0_164] : memref<33x256xf32, #tpu.memory_space<vmem>>, vector<32x256xf32>
    %cst_165 = arith.constant dense<0.000000e+00> : vector<2x256xf32>
    %332 = tpu.matmul %330, %331, %cst_165 {dimension_numbers = #tpu.dot_dimension_numbers<[1], [0], [0], [1], [0, 0, 1, 1], [], []>} : vector<2x32xf32>, vector<32x256xf32>, vector<2x256xf32> -> vector<2x256xf32>
    %c32 = arith.constant 32 : index
    %c0_166 = arith.constant 0 : index
    %333 = vector.load %arg8[%c32, %c0_166] : memref<33x256xf32, #tpu.memory_space<vmem>>, vector<1x256xf32>
    %334 = vector.broadcast %333 : vector<1x256xf32> to vector<2x256xf32>
    %335 = arith.addf %332, %334 : vector<2x256xf32>
    %cst_167 = arith.constant 0.000000e+00 : f32
    %336 = vector.broadcast %cst_167 : f32 to vector<2x256xf32>
    %337 = arith.cmpf ogt, %335, %336 : vector<2x256xf32>
    %cst_168 = arith.constant 0.00999999977 : f32
    %338 = vector.broadcast %cst_168 : f32 to vector<2x256xf32>
    %339 = arith.mulf %338, %335 : vector<2x256xf32>
    %340 = arith.select %337, %335, %339 : vector<2x256xi1>, vector<2x256xf32>
    %c0_169 = arith.constant 0 : index
    %c0_170 = arith.constant 0 : index
    %341 = vector.load %arg9[%c0_169, %c0_170] : memref<257x128xf32, #tpu.memory_space<vmem>>, vector<256x128xf32>
    %cst_171 = arith.constant dense<0.000000e+00> : vector<2x128xf32>
    %342 = tpu.matmul %340, %341, %cst_171 {dimension_numbers = #tpu.dot_dimension_numbers<[1], [0], [0], [1], [0, 0, 1, 1], [], []>} : vector<2x256xf32>, vector<256x128xf32>, vector<2x128xf32> -> vector<2x128xf32>
    %c256 = arith.constant 256 : index
    %c0_172 = arith.constant 0 : index
    %343 = vector.load %arg9[%c256, %c0_172] : memref<257x128xf32, #tpu.memory_space<vmem>>, vector<1x128xf32>
    %344 = vector.broadcast %343 : vector<1x128xf32> to vector<2x128xf32>
    %345 = arith.addf %342, %344 : vector<2x128xf32>
    %c0_173 = arith.constant 0 : index
    %c0_174 = arith.constant 0 : index
    %346 = vector.load %arg10[%c0_173, %c0_174] : memref<2x128xf32, #tpu.memory_space<vmem>>, vector<2x128xf32>
    tpu.vector_store %arg10[%c0_173, %c0_174], %345 {strides = array<i32>} : memref<2x128xf32, #tpu.memory_space<vmem>>, vector<2x128xf32>,
    return
  }
}

</mosaic_0001>

<llo_original>
// kernel: tpu_custom_call.1
$region0: #{tpu_custom_call.1}
  #allocation0 [shape = 'u32[]', space=smem, size = 0x4, offset = 0x4, fixed_abs, tag = 'smem constant byte address 0x4 - core index']
  #allocation1 [shape = 'u32[72,128]{1,0:T(1,128)}', space=vmem, size = 0x9000, scoped, tag = 'internal scratch']
  %s0 = inlined_call_operand.vmem [shape: f32[16,32], index: 0, kind: input, shape index: {}]
  %s1 = inlined_call_operand.vmem [shape: f32[2,8], index: 1, kind: input, shape index: {}]
  %s2 = inlined_call_operand.hbm [shape: f32[2,4,32,32], index: 2, kind: input, shape index: {}]
  %s3 = inlined_call_operand.hbm [shape: f32[2,32,128], index: 3, kind: input, shape index: {}]
  %s4 = inlined_call_operand.vmem [shape: f32[2,1,128], index: 4, kind: input, shape index: {}]
  %s5 = inlined_call_operand.vmem [shape: f32[2,128,32], index: 5, kind: input, shape index: {}]
  %s6 = inlined_call_operand.vmem [shape: f32[2,9,32], index: 6, kind: input, shape index: {}]
  %s7 = inlined_call_operand.vmem [shape: f32[2,32], index: 7, kind: input, shape index: {}]
  %s8 = inlined_call_operand.vmem [shape: f32[33,256], index: 8, kind: input, shape index: {}]
  %s9 = inlined_call_operand.vmem [shape: f32[257,128], index: 9, kind: input, shape index: {}]
  %s10 = inlined_call_operand.hbm [shape: f32[2,128], index: 10, kind: output, shape index: {}]
  %s11 = sld [smem:[#allocation0]]
  $region58: #{tpu_custom_call.1} parent=0
    _
  %s13 = ssub.s32 1, %s11
  %s14 = scalar_select 0, %s13, %s11
  $region1: #{tpu_custom_call.1} parent=0
    #allocation2 [shape = 'u8[131072]{0}', space=vmem, size = 0x20000, scoped, tag = 'input window, operand 2, single buffered']
    #allocation3 [shape = 's32[1]{0}', space=sflag, size = 0x4, scoped, tag = 'scoped memory for tpu_custom_call.1']
    #allocation4 [shape = 's32[1]{0}', space=sflag, size = 0x4, scoped, tag = 'scoped memory for tpu_custom_call.1']
    #allocation5 [shape = 'u8[32768]{0}', space=vmem, size = 0x8000, scoped, tag = 'input window, operand 3, single buffered']
    #allocation6 [shape = 's32[1]{0}', space=sflag, size = 0x4, scoped, tag = 'scoped memory for tpu_custom_call.1']
    #allocation7 [shape = 'u8[1024]{0}', space=vmem, size = 0x400, scoped, tag = 'output window, operand 0, single buffered']
    %15 = vsyncpa [#allocation3], 0
    %16 = vsyncpa [#allocation6], 0
    %17 = vsyncpa [#allocation4], 0
    // Predicated region
    $region2: #{tpu_custom_call.1} parent=1 // pred_check
      _
    $region3: #{tpu_custom_call.1} parent=1 // pred_check_branch
      %19 = sbr.rel (0) target = $region5
    $region4: #{tpu_custom_call.1} parent=1 // pred_region
      _
    $region5: #{tpu_custom_call.1} parent=1 // pred_fallthru
      _
    // Predicated region
    $region6: #{tpu_custom_call.1} parent=1 // pred_check
      _
    $region7: #{tpu_custom_call.1} parent=1 // pred_check_branch
      %21 = sbr.rel (0) target = $region9
    $region8: #{tpu_custom_call.1} parent=1 // pred_region
      _
    $region9: #{tpu_custom_call.1} parent=1 // pred_fallthru
      _
    // Predicated region
    $region10: #{tpu_custom_call.1} parent=1 // pred_check
      _
    $region11: #{tpu_custom_call.1} parent=1 // pred_check_branch
      %23 = sbr.rel (0) target = $region13
    $region12: #{tpu_custom_call.1} parent=1 // pred_region
      %25 = vsyncadd [#allocation3], 0
      %s26 = sshll.u32 %s2, 4
      %s27 = int_to_ptr.hbm [resolvable:$true] %s26
      %s28 = sshll.u32 [#allocation2], 4
      %s29 = int_to_ptr.vmem [resolvable:$true] %s28
      %34 = dma.hbm_to_vmem [thread:$0]  %s27, 4096, %s29, [#allocation3], 128, 128, 8
    $region13: #{tpu_custom_call.1} parent=1 // pred_fallthru
      _
    // Predicated region
    $region14: #{tpu_custom_call.1} parent=1 // pred_check
      _
    $region15: #{tpu_custom_call.1} parent=1 // pred_check_branch
      %36 = sbr.rel (0) target = $region17
    $region16: #{tpu_custom_call.1} parent=1 // pred_region
      %38 = vsyncadd [#allocation6], 0
      %s39 = sshll.u32 %s3, 4
      %s40 = int_to_ptr.hbm [resolvable:$true] %s39
      %s41 = sshll.u32 [#allocation5], 4
      %s42 = int_to_ptr.vmem [resolvable:$true] %s41
      %47 = dma.hbm_to_vmem [thread:$0]  %s40, 1024, %s42, [#allocation6], 128, 128, 8
    $region17: #{tpu_custom_call.1} parent=1 // pred_fallthru
      _
    // Predicated region
    $region18: #{tpu_custom_call.1} parent=1 // pred_check
      _
    $region19: #{tpu_custom_call.1} parent=1 // pred_check_branch
      %49 = sbr.rel (0) target = $region21
    $region20: #{tpu_custom_call.1} parent=1 // pred_region
      _
    $region21: #{tpu_custom_call.1} parent=1 // pred_fallthru
      _
    // Predicated region
    $region22: #{tpu_custom_call.1} parent=1 // pred_check
      _
    $region23: #{tpu_custom_call.1} parent=1 // pred_check_branch
      %51 = sbr.rel (0) target = $region25
    $region24: #{tpu_custom_call.1} parent=1 // pred_region
      _
    $region25: #{tpu_custom_call.1} parent=1 // pred_fallthru
      _
    // Predicated region
    $region26: #{tpu_custom_call.1} parent=1 // pred_check
      _
    $region27: #{tpu_custom_call.1} parent=1 // pred_check_branch
      %53 = sbr.rel (0) target = $region29
    $region28: #{tpu_custom_call.1} parent=1 // pred_region
      _
    $region29: #{tpu_custom_call.1} parent=1 // pred_fallthru
      _
    // Predicated region
    $region30: #{tpu_custom_call.1} parent=1 // pred_check
      _
    $region31: #{tpu_custom_call.1} parent=1 // pred_check_branch
      %55 = sbr.rel (0) target = $region33
    $region32: #{tpu_custom_call.1} parent=1 // pred_region
      _
    $region33: #{tpu_custom_call.1} parent=1 // pred_fallthru
      _
    // Predicated region
    $region34: #{tpu_custom_call.1} parent=1 // pred_check
      _
    $region35: #{tpu_custom_call.1} parent=1 // pred_check_branch
      %57 = sbr.rel (0) target = $region37
    $region36: #{tpu_custom_call.1} parent=1 // pred_region
      _
    $region37: #{tpu_custom_call.1} parent=1 // pred_fallthru
      _
    // Predicated region
    $region38: #{tpu_custom_call.1} parent=1 // pred_check
      _
    $region39: #{tpu_custom_call.1} parent=1 // pred_check_branch
      %59 = sbr.rel (0) target = $region41
    $region40: #{tpu_custom_call.1} parent=1 // pred_region
      _
    $region41: #{tpu_custom_call.1} parent=1 // pred_fallthru
      _
    // Predicated region
    $region42: #{tpu_custom_call.1} parent=1 // pred_check
      _
    $region43: #{tpu_custom_call.1} parent=1 // pred_check_branch
      %61 = sbr.rel (0) target = $region45
    $region44: #{tpu_custom_call.1} parent=1 // pred_region
      %63 = dma.done [#allocation3], 4096
    $region45: #{tpu_custom_call.1} parent=1 // pred_fallthru
      _
    // Predicated region
    $region46: #{tpu_custom_call.1} parent=1 // pred_check
      _
    $region47: #{tpu_custom_call.1} parent=1 // pred_check_branch
      %65 = sbr.rel (0) target = $region49
    $region48: #{tpu_custom_call.1} parent=1 // pred_region
      %67 = dma.done [#allocation6], 1024
    $region49: #{tpu_custom_call.1} parent=1 // pred_fallthru
      _
    %v68 = vld [vmem:[%s0] sm:$0xff]
    %v69 = vld [vmem:[%s0 + $0x8] sm:$0xff]
    %v70 = vld [vmem:[%s1] sm:$0x3]
    %v71 = vlaneseq
    %v72 = vshrl.u32 %v71, 7
    %v73 = vlaneseq
    %v74 = vand.u32 %v73, 127
    %vm75 = vcmp.le.s32.totalorder %v74, %v72
    %v77 = vrot.slane %v70, 6
    %vm79 = vcmask 1041408
    %v80 = vsel %vm79, %v70, %v77
    %v82 = vrot.slane %v80, 1
    %v83 = vrot.slane %v80, 2
    %v84 = vrot.slane %v80, 3
    %vm88 = vcmp.gt.f32.partialorder %v80, 0.5
    %vm89 = vcmp.gt.f32.partialorder %v82, 0.5
    %vm90 = vcmp.gt.f32.partialorder %v83, 0.5
    %vm91 = vcmp.gt.f32.partialorder %v84, 0.5
    %v92 = vsel %vm75, 1, 0
    %vm93 = vcmp.eq.s32.totalorder %v92, 1
    %v94 = vsel %vm88, 1, 0
    %v95 = vsel %vm89, 1, 0
    %v96 = vsel %vm90, 1, 0
    %v97 = vsel %vm91, 1, 0
    %v98 = vperm.slane %v94, 0
    %v99 = vperm.slane %v95, 0
    %v100 = vperm.slane %v96, 0
    %v101 = vperm.slane %v97, 0
    %vm102 = vcmp.eq.s32.totalorder %v98, 1
    %vm103 = vcmp.eq.s32.totalorder %v99, 1
    %vm104 = vcmp.eq.s32.totalorder %v100, 1
    %vm105 = vcmp.eq.s32.totalorder %v101, 1
    %vm106 = vmand %vm93, %vm102
    %vm107 = vmand %vm93, %vm103
    %vm108 = vmand %vm93, %vm104
    %vm109 = vmand %vm93, %vm105
    %v110 = vsel %vm106, 0.0, -1e+09
    %v111 = vsel %vm107, 0.0, -1e+09
    %v112 = vsel %vm108, 0.0, -1e+09
    %v113 = vsel %vm109, 0.0, -1e+09
    %v114 = vld [vmem:[%s6] sm:$0x1]
    %v115 = vld [vmem:[%s6 + $0x1] sm:$0x1]
    %v116 = vld [vmem:[%s6 + $0x2] sm:$0x1]
    %v117 = vld [vmem:[%s6 + $0x3] sm:$0x1]
    %v118 = vld [vmem:[%s6 + $0x4] sm:$0x1]
    %v119 = vld [vmem:[%s6 + $0x5] sm:$0x1]
    %v120 = vld [vmem:[%s6 + $0x6] sm:$0x1]
    %v121 = vld [vmem:[%s6 + $0x7] sm:$0x1]
    %v122 = vld [vmem:[%s6 + $0x8] sm:$0x1]
    %vm123 = vcmask 261120
    %v124 = vsel %vm123, %v68, 0.0
    %125 = vadd.xlane.f32.xlu0 %v124
    %v126 = vpop.xlane.xlu0 %125
    %v127 = vsel %vm123, %v69, 0.0
    %128 = vadd.xlane.f32.xlu0 %v127
    %v129 = vpop.xlane.xlu0 %128
    %v130 = vrcp.pop 32.0
    %v131 = vmul.f32 32.0, %v130
    %v132 = vsub.f32 1.0, %v131
    %v133 = vmul.f32 %v130, %v132
    %v134 = vadd.f32 %v130, %v133
    %vm135 = vweird.f32 %v130
    %v136 = vsel %vm135, %v130, %v134
    %v137 = vmul.f32 %v126, %v136
    %v138 = vmul.f32 %v129, %v136
    %v139 = vsub.f32 %v68, %v137
    %v140 = vsub.f32 %v69, %v138
    %v141 = vmul.f32 %v139, %v139
    %v142 = vmul.f32 %v140, %v140
    %v143 = vsel %vm123, %v141, 0.0
    %144 = vadd.xlane.f32.xlu0 %v143
    %v145 = vpop.xlane.xlu0 %144
    %v146 = vsel %vm123, %v142, 0.0
    %147 = vadd.xlane.f32.xlu0 %v146
    %v148 = vpop.xlane.xlu0 %147
    %v149 = vmul.f32 %v145, %v136
    %v150 = vmul.f32 %v148, %v136
    %v151 = vadd.f32 %v149, 1e-05
    %v152 = vadd.f32 %v150, 1e-05
    %v153 = vrsqrt.pop %v151
    %v154 = vmul.f32 %v153, %v151
    %v155 = vmul.f32 %v154, %v153
    %v156 = vmul.f32 0.5, %v155
    %v157 = vsub.f32 1.5, %v156
    %v158 = vmul.f32 %v153, %v157
    %vm159 = vweird.f32 %v151
    %vm160 = vweird.f32 %v153
    %vm161 = vmor %vm159, %vm160
    %v162 = vsel %vm161, %v153, %v158
    %v163 = vrsqrt.pop %v152
    %v164 = vmul.f32 %v163, %v152
    %v165 = vmul.f32 %v164, %v163
    %v166 = vmul.f32 0.5, %v165
    %v167 = vsub.f32 1.5, %v166
    %v168 = vmul.f32 %v163, %v167
    %vm169 = vweird.f32 %v152
    %vm170 = vweird.f32 %v163
    %vm171 = vmor %vm169, %vm170
    %v172 = vsel %vm171, %v163, %v168
    %v173 = vmul.f32 %v139, %v162
    %v174 = vmul.f32 %v140, %v172
    %v175 = vperm.slane %v114, 0
    %v176 = vmul.f32 %v173, %v175
    %v177 = vmul.f32 %v174, %v175
    %v178 = vperm.slane %v115, 0
    %v179 = vadd.f32 %v176, %v178
    %v180 = vadd.f32 %v177, %v178
    %v181 = vld [vmem:[#allocation2] sm:$0xff]
    %v182 = vld [vmem:[#allocation2 + $0x8] sm:$0xff]
    %v183 = vld [vmem:[#allocation2 + $0x10] sm:$0xff]
    %v184 = vld [vmem:[#allocation2 + $0x18] sm:$0xff]
    %v185 = vperm.slane %v116, 0
    %v187 = vsel %vm123, %v179, 0
    %v190 = vsel %vm123, %v180, 0
    %192 = vmatpush.msra.mxu0 0.0
    %193 = vmatpush.msra.mxu0 0.0
    %194 = vmatpush.msra.mxu0 0.0
    %195 = vmatpush.msra.mxu0 0.0
    %196 = vmatpush.msra.mxu0 0.0
    %197 = vmatpush.msra.mxu0 0.0
    %198 = vmatpush.msra.mxu0 0.0
    %199 = vmatpush.msra.mxu0 0.0
    %200 = vmatpush.msra.mxu0 0.0
    %201 = vmatpush.msra.mxu0 0.0
    %202 = vmatpush.msra.mxu0 0.0
    %203 = vmatpush.msra.mxu0 0.0
    %204 = vmatpush.msra.mxu0 %v184
    %205 = vmatpush.msra.mxu0 %v183
    %206 = vmatpush.msra.mxu0 %v182
    %207 = vmatpush.msra.mxu0 %v181
    %208 = vmatmul.f32.gmra.mxu0 %v187
    %v209 = vpop.f32.mrf.mxu0
    %v210 = vadd.f32 %v185, %v209
    %211 = vmatmul.f32.gmra.mxu0 %v190
    %v212 = vpop.f32.mrf.mxu0
    %v213 = vadd.f32 %v185, %v212
    %214 = vdwg.mxu0
    %s215 = scalar_lea.vmem [#allocation2], 32
    %v216 = vld [vmem:[%s215] sm:$0xff]
    %v217 = vld [vmem:[%s215 + $0x8] sm:$0xff]
    %v218 = vld [vmem:[%s215 + $0x10] sm:$0xff]
    %v219 = vld [vmem:[%s215 + $0x18] sm:$0xff]
    %v220 = vperm.slane %v117, 0
    %221 = vmatpush.msra.mxu0 0.0
    %222 = vmatpush.msra.mxu0 0.0
    %223 = vmatpush.msra.mxu0 0.0
    %224 = vmatpush.msra.mxu0 0.0
    %225 = vmatpush.msra.mxu0 0.0
    %226 = vmatpush.msra.mxu0 0.0
    %227 = vmatpush.msra.mxu0 0.0
    %228 = vmatpush.msra.mxu0 0.0
    %229 = vmatpush.msra.mxu0 0.0
    %230 = vmatpush.msra.mxu0 0.0
    %231 = vmatpush.msra.mxu0 0.0
    %232 = vmatpush.msra.mxu0 0.0
    %233 = vmatpush.msra.mxu0 %v219
    %234 = vmatpush.msra.mxu0 %v218
    %235 = vmatpush.msra.mxu0 %v217
    %236 = vmatpush.msra.mxu0 %v216
    %237 = vmatmul.f32.gmra.mxu0 %v187
    %v238 = vpop.f32.mrf.mxu0
    %v239 = vadd.f32 %v220, %v238
    %240 = vmatmul.f32.gmra.mxu0 %v190
    %v241 = vpop.f32.mrf.mxu0
    %v242 = vadd.f32 %v220, %v241
    %243 = vdwg.mxu0
    %s244 = scalar_lea.vmem [#allocation2], 64
    %v245 = vld [vmem:[%s244] sm:$0xff]
    %v246 = vld [vmem:[%s244 + $0x8] sm:$0xff]
    %v247 = vld [vmem:[%s244 + $0x10] sm:$0xff]
    %v248 = vld [vmem:[%s244 + $0x18] sm:$0xff]
    %v249 = vperm.slane %v118, 0
    %250 = vmatpush.msra.mxu0 0.0
    %251 = vmatpush.msra.mxu0 0.0
    %252 = vmatpush.msra.mxu0 0.0
    %253 = vmatpush.msra.mxu0 0.0
    %254 = vmatpush.msra.mxu0 0.0
    %255 = vmatpush.msra.mxu0 0.0
    %256 = vmatpush.msra.mxu0 0.0
    %257 = vmatpush.msra.mxu0 0.0
    %258 = vmatpush.msra.mxu0 0.0
    %259 = vmatpush.msra.mxu0 0.0
    %260 = vmatpush.msra.mxu0 0.0
    %261 = vmatpush.msra.mxu0 0.0
    %262 = vmatpush.msra.mxu0 %v248
    %263 = vmatpush.msra.mxu0 %v247
    %264 = vmatpush.msra.mxu0 %v246
    %265 = vmatpush.msra.mxu0 %v245
    %266 = vmatmul.f32.gmra.mxu0 %v187
    %v267 = vpop.f32.mrf.mxu0
    %v268 = vadd.f32 %v249, %v267
    %269 = vmatmul.f32.gmra.mxu0 %v190
    %v270 = vpop.f32.mrf.mxu0
    %v271 = vadd.f32 %v249, %v270
    %272 = vdwg.mxu0
    %275 = vrot.lane.b32.xlu0 %v210, 112
    %v276 = vpop.permute.xlu0 %275
    %277 = vrot.lane.b32.xlu0 %v213, 112
    %v278 = vpop.permute.xlu0 %277
    %281 = vrot.lane.b32.xlu0 %v239, 112
    %v282 = vpop.permute.xlu0 %281
    %283 = vrot.lane.b32.xlu0 %v242, 112
    %v284 = vpop.permute.xlu0 %283
    %287 = vrot.lane.b32.xlu0 %v268, 112
    %v288 = vpop.permute.xlu0 %287
    %289 = vrot.lane.b32.xlu0 %v271, 112
    %v290 = vpop.permute.xlu0 %289
    %vm293 = vcmask 130048
    %v294 = vsel %vm293, %v210, 0
    %v296 = vsel %vm293, %v239, 0
    %298 = vmatpush.xpose.msra.mxu0 0.0
    %299 = vmatpush.xpose.msra.mxu0 0.0
    %300 = vmatpush.xpose.msra.mxu0 0.0
    %301 = vmatpush.xpose.msra.mxu0 0.0
    %302 = vmatpush.xpose.msra.mxu0 0.0
    %303 = vmatpush.xpose.msra.mxu0 0.0
    %304 = vmatpush.xpose.msra.mxu0 0.0
    %305 = vmatpush.xpose.msra.mxu0 0.0
    %306 = vmatpush.xpose.msra.mxu0 0.0
    %307 = vmatpush.xpose.msra.mxu0 0.0
    %308 = vmatpush.xpose.msra.mxu0 0.0
    %309 = vmatpush.xpose.msra.mxu0 0.0
    %310 = vmatpush.xpose.msra.mxu0 0.0
    %311 = vmatpush.xpose.msra.mxu0 0.0
    %312 = vmatpush.xpose.msra.mxu0 0.0
    %313 = vmatpush.xpose.msra.mxu0 %v296
    %314 = vmatmul.f32.gmra.mxu0 %v294
    %v315 = vpop.f32.mrf.mxu0
    %v316 = vadd.f32 0.0, %v315
    %317 = vdwg.mxu0
    %v318 = vsel %vm293, %v213, 0
    %v320 = vsel %vm293, %v242, 0
    %322 = vmatpush.xpose.msra.mxu0 0.0
    %323 = vmatpush.xpose.msra.mxu0 0.0
    %324 = vmatpush.xpose.msra.mxu0 0.0
    %325 = vmatpush.xpose.msra.mxu0 0.0
    %326 = vmatpush.xpose.msra.mxu0 0.0
    %327 = vmatpush.xpose.msra.mxu0 0.0
    %328 = vmatpush.xpose.msra.mxu0 0.0
    %329 = vmatpush.xpose.msra.mxu0 0.0
    %330 = vmatpush.xpose.msra.mxu0 0.0
    %331 = vmatpush.xpose.msra.mxu0 0.0
    %332 = vmatpush.xpose.msra.mxu0 0.0
    %333 = vmatpush.xpose.msra.mxu0 0.0
    %334 = vmatpush.xpose.msra.mxu0 0.0
    %335 = vmatpush.xpose.msra.mxu0 0.0
    %336 = vmatpush.xpose.msra.mxu0 0.0
    %337 = vmatpush.xpose.msra.mxu0 %v320
    %338 = vmatmul.f32.gmra.mxu0 %v318
    %v339 = vpop.f32.mrf.mxu0
    %v340 = vadd.f32 0.0, %v339
    %341 = vdwg.mxu0
    %v342 = vsel %vm293, %v276, 0
    %v344 = vsel %vm293, %v282, 0
    %346 = vmatpush.xpose.msra.mxu0 0.0
    %347 = vmatpush.xpose.msra.mxu0 0.0
    %348 = vmatpush.xpose.msra.mxu0 0.0
    %349 = vmatpush.xpose.msra.mxu0 0.0
    %350 = vmatpush.xpose.msra.mxu0 0.0
    %351 = vmatpush.xpose.msra.mxu0 0.0
    %352 = vmatpush.xpose.msra.mxu0 0.0
    %353 = vmatpush.xpose.msra.mxu0 0.0
    %354 = vmatpush.xpose.msra.mxu0 0.0
    %355 = vmatpush.xpose.msra.mxu0 0.0
    %356 = vmatpush.xpose.msra.mxu0 0.0
    %357 = vmatpush.xpose.msra.mxu0 0.0
    %358 = vmatpush.xpose.msra.mxu0 0.0
    %359 = vmatpush.xpose.msra.mxu0 0.0
    %360 = vmatpush.xpose.msra.mxu0 0.0
    %361 = vmatpush.xpose.msra.mxu0 %v344
    %362 = vmatmul.f32.gmra.mxu0 %v342
    %v363 = vpop.f32.mrf.mxu0
    %v364 = vadd.f32 0.0, %v363
    %365 = vdwg.mxu0
    %v366 = vsel %vm293, %v278, 0
    %v368 = vsel %vm293, %v284, 0
    %370 = vmatpush.xpose.msra.mxu0 0.0
    %371 = vmatpush.xpose.msra.mxu0 0.0
    %372 = vmatpush.xpose.msra.mxu0 0.0
    %373 = vmatpush.xpose.msra.mxu0 0.0
    %374 = vmatpush.xpose.msra.mxu0 0.0
    %375 = vmatpush.xpose.msra.mxu0 0.0
    %376 = vmatpush.xpose.msra.mxu0 0.0
    %377 = vmatpush.xpose.msra.mxu0 0.0
    %378 = vmatpush.xpose.msra.mxu0 0.0
    %379 = vmatpush.xpose.msra.mxu0 0.0
    %380 = vmatpush.xpose.msra.mxu0 0.0
    %381 = vmatpush.xpose.msra.mxu0 0.0
    %382 = vmatpush.xpose.msra.mxu0 0.0
    %383 = vmatpush.xpose.msra.mxu0 0.0
    %384 = vmatpush.xpose.msra.mxu0 0.0
    %385 = vmatpush.xpose.msra.mxu0 %v368
    %386 = vmatmul.f32.gmra.mxu0 %v366
    %v387 = vpop.f32.mrf.mxu0
    %v388 = vadd.f32 0.0, %v387
    %389 = vdwg.mxu0
    %v390 = vmul.f32 %v316, 0.25
    %v391 = vmul.f32 %v340, 0.25
    %v392 = vmul.f32 %v364, 0.25
    %v393 = vmul.f32 %v388, 0.25
    %v394 = vadd.f32 %v390, %v110
    %v395 = vadd.f32 %v391, %v111
    %v396 = vadd.f32 %v392, %v112
    %v397 = vadd.f32 %v393, %v113
    %vm398 = vcmask 64512
    %v399 = vsel %vm398, %v394, -inf
    %400 = vmax.xlane.f32.xlu0 %v399
    %v401 = vpop.xlane.xlu0 %400
    %v402 = vsel %vm398, %v395, -inf
    %403 = vmax.xlane.f32.xlu0 %v402
    %v404 = vpop.xlane.xlu0 %403
    %v405 = vsel %vm398, %v396, -inf
    %406 = vmax.xlane.f32.xlu0 %v405
    %v407 = vpop.xlane.xlu0 %406
    %v408 = vsel %vm398, %v397, -inf
    %409 = vmax.xlane.f32.xlu0 %v408
    %v410 = vpop.xlane.xlu0 %409
    %v411 = vsub.f32 %v394, %v401
    %v412 = vsub.f32 %v395, %v404
    %v413 = vsub.f32 %v396, %v407
    %v414 = vsub.f32 %v397, %v410
    %v415 = vmul.f32 %v411, 1.442695
    %v416 = vpow.pop %v415
    %v417 = vmul.f32 %v412, 1.442695
    %v418 = vpow.pop %v417
    %v419 = vmul.f32 %v413, 1.442695
    %v420 = vpow.pop %v419
    %v421 = vmul.f32 %v414, 1.442695
    %v422 = vpow.pop %v421
    %v423 = vsel %vm398, %v416, 0.0
    %424 = vadd.xlane.f32.xlu0 %v423
    %v425 = vpop.xlane.xlu0 %424
    %v426 = vsel %vm398, %v418, 0.0
    %427 = vadd.xlane.f32.xlu0 %v426
    %v428 = vpop.xlane.xlu0 %427
    %v429 = vsel %vm398, %v420, 0.0
    %430 = vadd.xlane.f32.xlu0 %v429
    %v431 = vpop.xlane.xlu0 %430
    %v432 = vsel %vm398, %v422, 0.0
    %433 = vadd.xlane.f32.xlu0 %v432
    %v434 = vpop.xlane.xlu0 %433
    %v435 = vrcp.pop %v425
    %v436 = vmul.f32 %v425, %v435
    %v437 = vsub.f32 1.0, %v436
    %v438 = vmul.f32 %v435, %v437
    %v439 = vadd.f32 %v435, %v438
    %vm440 = vweird.f32 %v425
    %vm441 = vweird.f32 %v435
    %vm442 = vmor %vm440, %vm441
    %v443 = vsel %vm442, %v435, %v439
    %v444 = vand.u32 2147483647, %v425
    %vm445 = vcmp.eq.f32.partialorder %v444, 8.507059e+37
    %v446 = vand.u32 %v425, 2147483648
    %v447 = vor.u32 1.1754944e-38, %v446
    %v448 = vsel %vm445, %v447, %v443
    %v449 = vrcp.pop %v428
    %v450 = vmul.f32 %v428, %v449
    %v451 = vsub.f32 1.0, %v450
    %v452 = vmul.f32 %v449, %v451
    %v453 = vadd.f32 %v449, %v452
    %vm454 = vweird.f32 %v428
    %vm455 = vweird.f32 %v449
    %vm456 = vmor %vm454, %vm455
    %v457 = vsel %vm456, %v449, %v453
    %v458 = vand.u32 2147483647, %v428
    %vm459 = vcmp.eq.f32.partialorder %v458, 8.507059e+37
    %v460 = vand.u32 %v428, 2147483648
    %v461 = vor.u32 1.1754944e-38, %v460
    %v462 = vsel %vm459, %v461, %v457
    %v463 = vrcp.pop %v431
    %v464 = vmul.f32 %v431, %v463
    %v465 = vsub.f32 1.0, %v464
    %v466 = vmul.f32 %v463, %v465
    %v467 = vadd.f32 %v463, %v466
    %vm468 = vweird.f32 %v431
    %vm469 = vweird.f32 %v463
    %vm470 = vmor %vm468, %vm469
    %v471 = vsel %vm470, %v463, %v467
    %v472 = vand.u32 2147483647, %v431
    %vm473 = vcmp.eq.f32.partialorder %v472, 8.507059e+37
    %v474 = vand.u32 %v431, 2147483648
    %v475 = vor.u32 1.1754944e-38, %v474
    %v476 = vsel %vm473, %v475, %v471
    %v477 = vrcp.pop %v434
    %v478 = vmul.f32 %v434, %v477
    %v479 = vsub.f32 1.0, %v478
    %v480 = vmul.f32 %v477, %v479
    %v481 = vadd.f32 %v477, %v480
    %vm482 = vweird.f32 %v434
    %vm483 = vweird.f32 %v477
    %vm484 = vmor %vm482, %vm483
    %v485 = vsel %vm484, %v477, %v481
    %v486 = vand.u32 2147483647, %v434
    %vm487 = vcmp.eq.f32.partialorder %v486, 8.507059e+37
    %v488 = vand.u32 %v434, 2147483648
    %v489 = vor.u32 1.1754944e-38, %v488
    %v490 = vsel %vm487, %v489, %v485
    %v491 = vmul.f32 %v416, %v448
    %v492 = vmul.f32 %v418, %v462
    %v493 = vmul.f32 %v420, %v476
    %v494 = vmul.f32 %v422, %v490
    %v496 = vsel %vm398, %v491, 0
    %498 = vmatpush.msra.mxu0 0.0
    %499 = vmatpush.msra.mxu0 0.0
    %500 = vmatpush.msra.mxu0 0.0
    %501 = vmatpush.msra.mxu0 0.0
    %502 = vmatpush.msra.mxu0 0.0
    %503 = vmatpush.msra.mxu0 0.0
    %504 = vmatpush.msra.mxu0 0.0
    %505 = vmatpush.msra.mxu0 0.0
    %506 = vmatpush.msra.mxu0 0.0
    %507 = vmatpush.msra.mxu0 0.0
    %508 = vmatpush.msra.mxu0 0.0
    %509 = vmatpush.msra.mxu0 0.0
    %510 = vmatpush.msra.mxu0 0.0
    %511 = vmatpush.msra.mxu0 0.0
    %512 = vmatpush.msra.mxu0 0.0
    %513 = vmatpush.msra.mxu0 %v268
    %514 = vmatmul.f32.gmra.mxu0 %v496
    %v515 = vpop.f32.mrf.mxu0
    %v516 = vadd.f32 0.0, %v515
    %517 = vdwg.mxu0
    %v519 = vsel %vm398, %v492, 0
    %521 = vmatpush.msra.mxu0 0.0
    %522 = vmatpush.msra.mxu0 0.0
    %523 = vmatpush.msra.mxu0 0.0
    %524 = vmatpush.msra.mxu0 0.0
    %525 = vmatpush.msra.mxu0 0.0
    %526 = vmatpush.msra.mxu0 0.0
    %527 = vmatpush.msra.mxu0 0.0
    %528 = vmatpush.msra.mxu0 0.0
    %529 = vmatpush.msra.mxu0 0.0
    %530 = vmatpush.msra.mxu0 0.0
    %531 = vmatpush.msra.mxu0 0.0
    %532 = vmatpush.msra.mxu0 0.0
    %533 = vmatpush.msra.mxu0 0.0
    %534 = vmatpush.msra.mxu0 0.0
    %535 = vmatpush.msra.mxu0 0.0
    %536 = vmatpush.msra.mxu0 %v271
    %537 = vmatmul.f32.gmra.mxu0 %v519
    %v538 = vpop.f32.mrf.mxu0
    %v539 = vadd.f32 0.0, %v538
    %540 = vdwg.mxu0
    %v542 = vsel %vm398, %v493, 0
    %544 = vmatpush.msra.mxu0 0.0
    %545 = vmatpush.msra.mxu0 0.0
    %546 = vmatpush.msra.mxu0 0.0
    %547 = vmatpush.msra.mxu0 0.0
    %548 = vmatpush.msra.mxu0 0.0
    %549 = vmatpush.msra.mxu0 0.0
    %550 = vmatpush.msra.mxu0 0.0
    %551 = vmatpush.msra.mxu0 0.0
    %552 = vmatpush.msra.mxu0 0.0
    %553 = vmatpush.msra.mxu0 0.0
    %554 = vmatpush.msra.mxu0 0.0
    %555 = vmatpush.msra.mxu0 0.0
    %556 = vmatpush.msra.mxu0 0.0
    %557 = vmatpush.msra.mxu0 0.0
    %558 = vmatpush.msra.mxu0 0.0
    %559 = vmatpush.msra.mxu0 %v288
    %560 = vmatmul.f32.gmra.mxu0 %v542
    %v561 = vpop.f32.mrf.mxu0
    %v562 = vadd.f32 0.0, %v561
    %563 = vdwg.mxu0
    %v565 = vsel %vm398, %v494, 0
    %567 = vmatpush.msra.mxu0 0.0
    %568 = vmatpush.msra.mxu0 0.0
    %569 = vmatpush.msra.mxu0 0.0
    %570 = vmatpush.msra.mxu0 0.0
    %571 = vmatpush.msra.mxu0 0.0
    %572 = vmatpush.msra.mxu0 0.0
    %573 = vmatpush.msra.mxu0 0.0
    %574 = vmatpush.msra.mxu0 0.0
    %575 = vmatpush.msra.mxu0 0.0
    %576 = vmatpush.msra.mxu0 0.0
    %577 = vmatpush.msra.mxu0 0.0
    %578 = vmatpush.msra.mxu0 0.0
    %579 = vmatpush.msra.mxu0 0.0
    %580 = vmatpush.msra.mxu0 0.0
    %581 = vmatpush.msra.mxu0 0.0
    %582 = vmatpush.msra.mxu0 %v290
    %583 = vmatmul.f32.gmra.mxu0 %v565
    %v584 = vpop.f32.mrf.mxu0
    %v585 = vadd.f32 0.0, %v584
    %586 = vdwg.mxu0
    %589 = vrot.lane.b32.xlu0 %v562, 16
    %v590 = vpop.permute.xlu0 %589
    %591 = vrot.lane.b32.xlu0 %v585, 16
    %v592 = vpop.permute.xlu0 %591
    %v595 = vsel %vm293, %v516, %v590
    %v596 = vsel %vm293, %v539, %v592
    %s597 = scalar_lea.vmem [#allocation2], 96
    %v598 = vld [vmem:[%s597] sm:$0xff]
    %v599 = vld [vmem:[%s597 + $0x8] sm:$0xff]
    %v600 = vld [vmem:[%s597 + $0x10] sm:$0xff]
    %v601 = vld [vmem:[%s597 + $0x18] sm:$0xff]
    %v603 = vsel %vm123, %v595, 0
    %v606 = vsel %vm123, %v596, 0
    %608 = vmatpush.msra.mxu0 0.0
    %609 = vmatpush.msra.mxu0 0.0
    %610 = vmatpush.msra.mxu0 0.0
    %611 = vmatpush.msra.mxu0 0.0
    %612 = vmatpush.msra.mxu0 0.0
    %613 = vmatpush.msra.mxu0 0.0
    %614 = vmatpush.msra.mxu0 0.0
    %615 = vmatpush.msra.mxu0 0.0
    %616 = vmatpush.msra.mxu0 0.0
    %617 = vmatpush.msra.mxu0 0.0
    %618 = vmatpush.msra.mxu0 0.0
    %619 = vmatpush.msra.mxu0 0.0
    %620 = vmatpush.msra.mxu0 %v601
    %621 = vmatpush.msra.mxu0 %v600
    %622 = vmatpush.msra.mxu0 %v599
    %623 = vmatpush.msra.mxu0 %v598
    %624 = vmatmul.f32.gmra.mxu0 %v603
    %v625 = vpop.f32.mrf.mxu0
    %v626 = vadd.f32 0.0, %v625
    %627 = vmatmul.f32.gmra.mxu0 %v606
    %v628 = vpop.f32.mrf.mxu0
    %v629 = vadd.f32 0.0, %v628
    %630 = vdwg.mxu0
    %v631 = vadd.f32 %v68, %v626
    %v632 = vadd.f32 %v69, %v629
    %v633 = vperm.slane %v119, 0
    %v634 = vadd.f32 %v631, %v633
    %v635 = vadd.f32 %v632, %v633
    %v636 = vsel %vm123, %v634, 0.0
    %637 = vadd.xlane.f32.xlu0 %v636
    %v638 = vpop.xlane.xlu0 %637
    %v639 = vsel %vm123, %v635, 0.0
    %640 = vadd.xlane.f32.xlu0 %v639
    %v641 = vpop.xlane.xlu0 %640
    %v642 = vmul.f32 %v638, %v136
    %v643 = vmul.f32 %v641, %v136
    %v644 = vsub.f32 %v634, %v642
    %v645 = vsub.f32 %v635, %v643
    %v646 = vmul.f32 %v644, %v644
    %v647 = vmul.f32 %v645, %v645
    %v648 = vsel %vm123, %v646, 0.0
    %649 = vadd.xlane.f32.xlu0 %v648
    %v650 = vpop.xlane.xlu0 %649
    %v651 = vsel %vm123, %v647, 0.0
    %652 = vadd.xlane.f32.xlu0 %v651
    %v653 = vpop.xlane.xlu0 %652
    %v654 = vmul.f32 %v650, %v136
    %v655 = vmul.f32 %v653, %v136
    %v656 = vadd.f32 %v654, 1e-05
    %v657 = vadd.f32 %v655, 1e-05
    %v658 = vrsqrt.pop %v656
    %v659 = vmul.f32 %v658, %v656
    %v660 = vmul.f32 %v659, %v658
    %v661 = vmul.f32 0.5, %v660
    %v662 = vsub.f32 1.5, %v661
    %v663 = vmul.f32 %v658, %v662
    %vm664 = vweird.f32 %v656
    %vm665 = vweird.f32 %v658
    %vm666 = vmor %vm664, %vm665
    %v667 = vsel %vm666, %v658, %v663
    %v668 = vrsqrt.pop %v657
    %v669 = vmul.f32 %v668, %v657
    %v670 = vmul.f32 %v669, %v668
    %v671 = vmul.f32 0.5, %v670
    %v672 = vsub.f32 1.5, %v671
    %v673 = vmul.f32 %v668, %v672
    %vm674 = vweird.f32 %v657
    %vm675 = vweird.f32 %v668
    %vm676 = vmor %vm674, %vm675
    %v677 = vsel %vm676, %v668, %v673
    %v678 = vmul.f32 %v644, %v667
    %v679 = vmul.f32 %v645, %v677
    %v680 = vperm.slane %v120, 0
    %v681 = vmul.f32 %v678, %v680
    %v682 = vmul.f32 %v679, %v680
    %v683 = vperm.slane %v121, 0
    %v684 = vadd.f32 %v681, %v683
    %v685 = vadd.f32 %v682, %v683
    %v686 = vld [vmem:[#allocation5] sm:$0xff]
    %v687 = vld [vmem:[#allocation5 + $0x8] sm:$0xff]
    %v688 = vld [vmem:[#allocation5 + $0x10] sm:$0xff]
    %v689 = vld [vmem:[#allocation5 + $0x18] sm:$0xff]
    %v690 = vld [vmem:[%s4] sm:$0x1]
    %v692 = vperm.slane %v690, 0
    %v695 = vsel %vm123, %v684, 0
    %v698 = vsel %vm123, %v685, 0
    %700 = vmatpush.msra.mxu0 0.0
    %701 = vmatpush.msra.mxu0 0.0
    %702 = vmatpush.msra.mxu0 0.0
    %703 = vmatpush.msra.mxu0 0.0
    %704 = vmatpush.msra.mxu0 0.0
    %705 = vmatpush.msra.mxu0 0.0
    %706 = vmatpush.msra.mxu0 0.0
    %707 = vmatpush.msra.mxu0 0.0
    %708 = vmatpush.msra.mxu0 0.0
    %709 = vmatpush.msra.mxu0 0.0
    %710 = vmatpush.msra.mxu0 0.0
    %711 = vmatpush.msra.mxu0 0.0
    %712 = vmatpush.msra.mxu0 %v689
    %713 = vmatpush.msra.mxu0 %v688
    %714 = vmatpush.msra.mxu0 %v687
    %715 = vmatpush.msra.mxu0 %v686
    %716 = vmatmul.f32.gmra.mxu0 %v695
    %v717 = vpop.f32.mrf.mxu0
    %v718 = vadd.f32 %v692, %v717
    %719 = vmatmul.f32.gmra.mxu0 %v698
    %v720 = vpop.f32.mrf.mxu0
    %v721 = vadd.f32 %v692, %v720
    %722 = vdwg.mxu0
    %v723 = vmul.f32 %v718, %v718
    %v724 = vmul.f32 %v721, %v721
    %v725 = vmul.f32 %v718, %v723
    %v726 = vmul.f32 %v721, %v724
    %v727 = vmul.f32 %v725, 0.044715
    %v728 = vmul.f32 %v726, 0.044715
    %v729 = vadd.f32 %v718, %v727
    %v730 = vadd.f32 %v721, %v728
    %v731 = vmul.f32 %v729, 0.7978846
    %v732 = vmul.f32 %v730, 0.7978846
    %v733 = vtanh.pop %v731
    %v734 = vtanh.pop %v732
    %v735 = vadd.f32 %v733, 1.0
    %v736 = vadd.f32 %v734, 1.0
    %v737 = vmul.f32 %v735, 0.5
    %v738 = vmul.f32 %v736, 0.5
    %v739 = vmul.f32 %v718, %v737
    %v740 = vmul.f32 %v721, %v738
    %v741 = vld [vmem:[%s5] sm:$0xff]
    %v742 = vld [vmem:[%s5 + $0x8] sm:$0xff]
    %v743 = vld [vmem:[%s5 + $0x10] sm:$0xff]
    %v744 = vld [vmem:[%s5 + $0x18] sm:$0xff]
    %v745 = vld [vmem:[%s5 + $0x20] sm:$0xff]
    %v746 = vld [vmem:[%s5 + $0x28] sm:$0xff]
    %v747 = vld [vmem:[%s5 + $0x30] sm:$0xff]
    %v748 = vld [vmem:[%s5 + $0x38] sm:$0xff]
    %v749 = vld [vmem:[%s5 + $0x40] sm:$0xff]
    %v750 = vld [vmem:[%s5 + $0x48] sm:$0xff]
    %v751 = vld [vmem:[%s5 + $0x50] sm:$0xff]
    %v752 = vld [vmem:[%s5 + $0x58] sm:$0xff]
    %v753 = vld [vmem:[%s5 + $0x60] sm:$0xff]
    %v754 = vld [vmem:[%s5 + $0x68] sm:$0xff]
    %v755 = vld [vmem:[%s5 + $0x70] sm:$0xff]
    %v756 = vld [vmem:[%s5 + $0x78] sm:$0xff]
    %757 = vmatpush.msra.mxu0 %v756
    %758 = vmatpush.msra.mxu0 %v755
    %759 = vmatpush.msra.mxu0 %v754
    %760 = vmatpush.msra.mxu0 %v753
    %761 = vmatpush.msra.mxu0 %v752
    %762 = vmatpush.msra.mxu0 %v751
    %763 = vmatpush.msra.mxu0 %v750
    %764 = vmatpush.msra.mxu0 %v749
    %765 = vmatpush.msra.mxu0 %v748
    %766 = vmatpush.msra.mxu0 %v747
    %767 = vmatpush.msra.mxu0 %v746
    %768 = vmatpush.msra.mxu0 %v745
    %769 = vmatpush.msra.mxu0 %v744
    %770 = vmatpush.msra.mxu0 %v743
    %771 = vmatpush.msra.mxu0 %v742
    %772 = vmatpush.msra.mxu0 %v741
    %773 = vmatmul.f32.gmra.mxu0 %v739
    %v774 = vpop.f32.mrf.mxu0
    %v775 = vadd.f32 0.0, %v774
    %776 = vmatmul.f32.gmra.mxu0 %v740
    %v777 = vpop.f32.mrf.mxu0
    %v778 = vadd.f32 0.0, %v777
    %779 = vdwg.mxu0
    %v780 = vadd.f32 %v634, %v775
    %v781 = vadd.f32 %v635, %v778
    %v782 = vperm.slane %v122, 0
    %v783 = vadd.f32 %v780, %v782
    %v784 = vadd.f32 %v781, %v782
    %s785 = scalar_lea.vmem %s6, 16
    %v786 = vld [vmem:[%s785] sm:$0x1]
    %v787 = vld [vmem:[%s785 + $0x1] sm:$0x1]
    %v788 = vld [vmem:[%s785 + $0x2] sm:$0x1]
    %v789 = vld [vmem:[%s785 + $0x3] sm:$0x1]
    %v790 = vld [vmem:[%s785 + $0x4] sm:$0x1]
    %v791 = vld [vmem:[%s785 + $0x5] sm:$0x1]
    %v792 = vld [vmem:[%s785 + $0x6] sm:$0x1]
    %v793 = vld [vmem:[%s785 + $0x7] sm:$0x1]
    %v794 = vld [vmem:[%s785 + $0x8] sm:$0x1]
    %v795 = vsel %vm123, %v783, 0.0
    %796 = vadd.xlane.f32.xlu0 %v795
    %v797 = vpop.xlane.xlu0 %796
    %v798 = vsel %vm123, %v784, 0.0
    %799 = vadd.xlane.f32.xlu0 %v798
    %v800 = vpop.xlane.xlu0 %799
    %v801 = vmul.f32 %v797, %v136
    %v802 = vmul.f32 %v800, %v136
    %v803 = vsub.f32 %v783, %v801
    %v804 = vsub.f32 %v784, %v802
    %v805 = vmul.f32 %v803, %v803
    %v806 = vmul.f32 %v804, %v804
    %v807 = vsel %vm123, %v805, 0.0
    %808 = vadd.xlane.f32.xlu0 %v807
    %v809 = vpop.xlane.xlu0 %808
    %v810 = vsel %vm123, %v806, 0.0
    %811 = vadd.xlane.f32.xlu0 %v810
    %v812 = vpop.xlane.xlu0 %811
    %v813 = vmul.f32 %v809, %v136
    %v814 = vmul.f32 %v812, %v136
    %v815 = vadd.f32 %v813, 1e-05
    %v816 = vadd.f32 %v814, 1e-05
    %v817 = vrsqrt.pop %v815
    %v818 = vmul.f32 %v817, %v815
    %v819 = vmul.f32 %v818, %v817
    %v820 = vmul.f32 0.5, %v819
    %v821 = vsub.f32 1.5, %v820
    %v822 = vmul.f32 %v817, %v821
    %vm823 = vweird.f32 %v815
    %vm824 = vweird.f32 %v817
    %vm825 = vmor %vm823, %vm824
    %v826 = vsel %vm825, %v817, %v822
    %v827 = vrsqrt.pop %v816
    %v828 = vmul.f32 %v827, %v816
    %v829 = vmul.f32 %v828, %v827
    %v830 = vmul.f32 0.5, %v829
    %v831 = vsub.f32 1.5, %v830
    %v832 = vmul.f32 %v827, %v831
    %vm833 = vweird.f32 %v816
    %vm834 = vweird.f32 %v827
    %vm835 = vmor %vm833, %vm834
    %v836 = vsel %vm835, %v827, %v832
    %v837 = vmul.f32 %v803, %v826
    %v838 = vmul.f32 %v804, %v836
    %v839 = vperm.slane %v786, 0
    %v840 = vmul.f32 %v837, %v839
    %v841 = vmul.f32 %v838, %v839
    %v842 = vperm.slane %v787, 0
    %v843 = vadd.f32 %v840, %v842
    %v844 = vadd.f32 %v841, %v842
    %s845 = scalar_lea.vmem [#allocation2], 128
    %v846 = vld [vmem:[%s845] sm:$0xff]
    %v847 = vld [vmem:[%s845 + $0x8] sm:$0xff]
    %v848 = vld [vmem:[%s845 + $0x10] sm:$0xff]
    %v849 = vld [vmem:[%s845 + $0x18] sm:$0xff]
    %v850 = vperm.slane %v788, 0
    %v852 = vsel %vm123, %v843, 0
    %v855 = vsel %vm123, %v844, 0
    %857 = vmatpush.msra.mxu0 0.0
    %858 = vmatpush.msra.mxu0 0.0
    %859 = vmatpush.msra.mxu0 0.0
    %860 = vmatpush.msra.mxu0 0.0
    %861 = vmatpush.msra.mxu0 0.0
    %862 = vmatpush.msra.mxu0 0.0
    %863 = vmatpush.msra.mxu0 0.0
    %864 = vmatpush.msra.mxu0 0.0
    %865 = vmatpush.msra.mxu0 0.0
    %866 = vmatpush.msra.mxu0 0.0
    %867 = vmatpush.msra.mxu0 0.0
    %868 = vmatpush.msra.mxu0 0.0
    %869 = vmatpush.msra.mxu0 %v849
    %870 = vmatpush.msra.mxu0 %v848
    %871 = vmatpush.msra.mxu0 %v847
    %872 = vmatpush.msra.mxu0 %v846
    %873 = vmatmul.f32.gmra.mxu0 %v852
    %v874 = vpop.f32.mrf.mxu0
    %v875 = vadd.f32 %v850, %v874
    %876 = vmatmul.f32.gmra.mxu0 %v855
    %v877 = vpop.f32.mrf.mxu0
    %v878 = vadd.f32 %v850, %v877
    %879 = vdwg.mxu0
    %s880 = scalar_lea.vmem [#allocation2], 160
    %v881 = vld [vmem:[%s880] sm:$0xff]
    %v882 = vld [vmem:[%s880 + $0x8] sm:$0xff]
    %v883 = vld [vmem:[%s880 + $0x10] sm:$0xff]
    %v884 = vld [vmem:[%s880 + $0x18] sm:$0xff]
    %v885 = vperm.slane %v789, 0
    %886 = vmatpush.msra.mxu0 0.0
    %887 = vmatpush.msra.mxu0 0.0
    %888 = vmatpush.msra.mxu0 0.0
    %889 = vmatpush.msra.mxu0 0.0
    %890 = vmatpush.msra.mxu0 0.0
    %891 = vmatpush.msra.mxu0 0.0
    %892 = vmatpush.msra.mxu0 0.0
    %893 = vmatpush.msra.mxu0 0.0
    %894 = vmatpush.msra.mxu0 0.0
    %895 = vmatpush.msra.mxu0 0.0
    %896 = vmatpush.msra.mxu0 0.0
    %897 = vmatpush.msra.mxu0 0.0
    %898 = vmatpush.msra.mxu0 %v884
    %899 = vmatpush.msra.mxu0 %v883
    %900 = vmatpush.msra.mxu0 %v882
    %901 = vmatpush.msra.mxu0 %v881
    %902 = vmatmul.f32.gmra.mxu0 %v852
    %v903 = vpop.f32.mrf.mxu0
    %v904 = vadd.f32 %v885, %v903
    %905 = vmatmul.f32.gmra.mxu0 %v855
    %v906 = vpop.f32.mrf.mxu0
    %v907 = vadd.f32 %v885, %v906
    %908 = vdwg.mxu0
    %s909 = scalar_lea.vmem [#allocation2], 192
    %v910 = vld [vmem:[%s909] sm:$0xff]
    %v911 = vld [vmem:[%s909 + $0x8] sm:$0xff]
    %v912 = vld [vmem:[%s909 + $0x10] sm:$0xff]
    %v913 = vld [vmem:[%s909 + $0x18] sm:$0xff]
    %v914 = vperm.slane %v790, 0
    %915 = vmatpush.msra.mxu0 0.0
    %916 = vmatpush.msra.mxu0 0.0
    %917 = vmatpush.msra.mxu0 0.0
    %918 = vmatpush.msra.mxu0 0.0
    %919 = vmatpush.msra.mxu0 0.0
    %920 = vmatpush.msra.mxu0 0.0
    %921 = vmatpush.msra.mxu0 0.0
    %922 = vmatpush.msra.mxu0 0.0
    %923 = vmatpush.msra.mxu0 0.0
    %924 = vmatpush.msra.mxu0 0.0
    %925 = vmatpush.msra.mxu0 0.0
    %926 = vmatpush.msra.mxu0 0.0
    %927 = vmatpush.msra.mxu0 %v913
    %928 = vmatpush.msra.mxu0 %v912
    %929 = vmatpush.msra.mxu0 %v911
    %930 = vmatpush.msra.mxu0 %v910
    %931 = vmatmul.f32.gmra.mxu0 %v852
    %v932 = vpop.f32.mrf.mxu0
    %v933 = vadd.f32 %v914, %v932
    %934 = vmatmul.f32.gmra.mxu0 %v855
    %v935 = vpop.f32.mrf.mxu0
    %v936 = vadd.f32 %v914, %v935
    %937 = vdwg.mxu0
    %940 = vrot.lane.b32.xlu0 %v875, 112
    %v941 = vpop.permute.xlu0 %940
    %942 = vrot.lane.b32.xlu0 %v878, 112
    %v943 = vpop.permute.xlu0 %942
    %946 = vrot.lane.b32.xlu0 %v904, 112
    %v947 = vpop.permute.xlu0 %946
    %948 = vrot.lane.b32.xlu0 %v907, 112
    %v949 = vpop.permute.xlu0 %948
    %952 = vrot.lane.b32.xlu0 %v933, 112
    %v953 = vpop.permute.xlu0 %952
    %954 = vrot.lane.b32.xlu0 %v936, 112
    %v955 = vpop.permute.xlu0 %954
    %v958 = vsel %vm293, %v875, 0
    %v960 = vsel %vm293, %v904, 0
    %962 = vmatpush.xpose.msra.mxu0 0.0
    %963 = vmatpush.xpose.msra.mxu0 0.0
    %964 = vmatpush.xpose.msra.mxu0 0.0
    %965 = vmatpush.xpose.msra.mxu0 0.0
    %966 = vmatpush.xpose.msra.mxu0 0.0
    %967 = vmatpush.xpose.msra.mxu0 0.0
    %968 = vmatpush.xpose.msra.mxu0 0.0
    %969 = vmatpush.xpose.msra.mxu0 0.0
    %970 = vmatpush.xpose.msra.mxu0 0.0
    %971 = vmatpush.xpose.msra.mxu0 0.0
    %972 = vmatpush.xpose.msra.mxu0 0.0
    %973 = vmatpush.xpose.msra.mxu0 0.0
    %974 = vmatpush.xpose.msra.mxu0 0.0
    %975 = vmatpush.xpose.msra.mxu0 0.0
    %976 = vmatpush.xpose.msra.mxu0 0.0
    %977 = vmatpush.xpose.msra.mxu0 %v960
    %978 = vmatmul.f32.gmra.mxu0 %v958
    %v979 = vpop.f32.mrf.mxu0
    %v980 = vadd.f32 0.0, %v979
    %981 = vdwg.mxu0
    %v982 = vsel %vm293, %v878, 0
    %v984 = vsel %vm293, %v907, 0
    %986 = vmatpush.xpose.msra.mxu0 0.0
    %987 = vmatpush.xpose.msra.mxu0 0.0
    %988 = vmatpush.xpose.msra.mxu0 0.0
    %989 = vmatpush.xpose.msra.mxu0 0.0
    %990 = vmatpush.xpose.msra.mxu0 0.0
    %991 = vmatpush.xpose.msra.mxu0 0.0
    %992 = vmatpush.xpose.msra.mxu0 0.0
    %993 = vmatpush.xpose.msra.mxu0 0.0
    %994 = vmatpush.xpose.msra.mxu0 0.0
    %995 = vmatpush.xpose.msra.mxu0 0.0
    %996 = vmatpush.xpose.msra.mxu0 0.0
    %997 = vmatpush.xpose.msra.mxu0 0.0
    %998 = vmatpush.xpose.msra.mxu0 0.0
    %999 = vmatpush.xpose.msra.mxu0 0.0
    %1000 = vmatpush.xpose.msra.mxu0 0.0
    %1001 = vmatpush.xpose.msra.mxu0 %v984
    %1002 = vmatmul.f32.gmra.mxu0 %v982
    %v1003 = vpop.f32.mrf.mxu0
    %v1004 = vadd.f32 0.0, %v1003
    %1005 = vdwg.mxu0
    %v1006 = vsel %vm293, %v941, 0
    %v1008 = vsel %vm293, %v947, 0
    %1010 = vmatpush.xpose.msra.mxu0 0.0
    %1011 = vmatpush.xpose.msra.mxu0 0.0
    %1012 = vmatpush.xpose.msra.mxu0 0.0
    %1013 = vmatpush.xpose.msra.mxu0 0.0
    %1014 = vmatpush.xpose.msra.mxu0 0.0
    %1015 = vmatpush.xpose.msra.mxu0 0.0
    %1016 = vmatpush.xpose.msra.mxu0 0.0
    %1017 = vmatpush.xpose.msra.mxu0 0.0
    %1018 = vmatpush.xpose.msra.mxu0 0.0
    %1019 = vmatpush.xpose.msra.mxu0 0.0
    %1020 = vmatpush.xpose.msra.mxu0 0.0
    %1021 = vmatpush.xpose.msra.mxu0 0.0
    %1022 = vmatpush.xpose.msra.mxu0 0.0
    %1023 = vmatpush.xpose.msra.mxu0 0.0
    %1024 = vmatpush.xpose.msra.mxu0 0.0
    %1025 = vmatpush.xpose.msra.mxu0 %v1008
    %1026 = vmatmul.f32.gmra.mxu0 %v1006
    %v1027 = vpop.f32.mrf.mxu0
    %v1028 = vadd.f32 0.0, %v1027
    %1029 = vdwg.mxu0
    %v1030 = vsel %vm293, %v943, 0
    %v1032 = vsel %vm293, %v949, 0
    %1034 = vmatpush.xpose.msra.mxu0 0.0
    %1035 = vmatpush.xpose.msra.mxu0 0.0
    %1036 = vmatpush.xpose.msra.mxu0 0.0
    %1037 = vmatpush.xpose.msra.mxu0 0.0
    %1038 = vmatpush.xpose.msra.mxu0 0.0
    %1039 = vmatpush.xpose.msra.mxu0 0.0
    %1040 = vmatpush.xpose.msra.mxu0 0.0
    %1041 = vmatpush.xpose.msra.mxu0 0.0
    %1042 = vmatpush.xpose.msra.mxu0 0.0
    %1043 = vmatpush.xpose.msra.mxu0 0.0
    %1044 = vmatpush.xpose.msra.mxu0 0.0
    %1045 = vmatpush.xpose.msra.mxu0 0.0
    %1046 = vmatpush.xpose.msra.mxu0 0.0
    %1047 = vmatpush.xpose.msra.mxu0 0.0
    %1048 = vmatpush.xpose.msra.mxu0 0.0
    %1049 = vmatpush.xpose.msra.mxu0 %v1032
    %1050 = vmatmul.f32.gmra.mxu0 %v1030
    %v1051 = vpop.f32.mrf.mxu0
    %v1052 = vadd.f32 0.0, %v1051
    %1053 = vdwg.mxu0
    %v1054 = vmul.f32 %v980, 0.25
    %v1055 = vmul.f32 %v1004, 0.25
    %v1056 = vmul.f32 %v1028, 0.25
    %v1057 = vmul.f32 %v1052, 0.25
    %v1058 = vadd.f32 %v1054, %v110
    %v1059 = vadd.f32 %v1055, %v111
    %v1060 = vadd.f32 %v1056, %v112
    %v1061 = vadd.f32 %v1057, %v113
    %v1062 = vsel %vm398, %v1058, -inf
    %1063 = vmax.xlane.f32.xlu0 %v1062
    %v1064 = vpop.xlane.xlu0 %1063
    %v1065 = vsel %vm398, %v1059, -inf
    %1066 = vmax.xlane.f32.xlu0 %v1065
    %v1067 = vpop.xlane.xlu0 %1066
    %v1068 = vsel %vm398, %v1060, -inf
    %1069 = vmax.xlane.f32.xlu0 %v1068
    %v1070 = vpop.xlane.xlu0 %1069
    %v1071 = vsel %vm398, %v1061, -inf
    %1072 = vmax.xlane.f32.xlu0 %v1071
    %v1073 = vpop.xlane.xlu0 %1072
    %v1074 = vsub.f32 %v1058, %v1064
    %v1075 = vsub.f32 %v1059, %v1067
    %v1076 = vsub.f32 %v1060, %v1070
    %v1077 = vsub.f32 %v1061, %v1073
    %v1078 = vmul.f32 %v1074, 1.442695
    %v1079 = vpow.pop %v1078
    %v1080 = vmul.f32 %v1075, 1.442695
    %v1081 = vpow.pop %v1080
    %v1082 = vmul.f32 %v1076, 1.442695
    %v1083 = vpow.pop %v1082
    %v1084 = vmul.f32 %v1077, 1.442695
    %v1085 = vpow.pop %v1084
    %v1086 = vsel %vm398, %v1079, 0.0
    %1087 = vadd.xlane.f32.xlu0 %v1086
    %v1088 = vpop.xlane.xlu0 %1087
    %v1089 = vsel %vm398, %v1081, 0.0
    %1090 = vadd.xlane.f32.xlu0 %v1089
    %v1091 = vpop.xlane.xlu0 %1090
    %v1092 = vsel %vm398, %v1083, 0.0
    %1093 = vadd.xlane.f32.xlu0 %v1092
    %v1094 = vpop.xlane.xlu0 %1093
    %v1095 = vsel %vm398, %v1085, 0.0
    %1096 = vadd.xlane.f32.xlu0 %v1095
    %v1097 = vpop.xlane.xlu0 %1096
    %v1098 = vrcp.pop %v1088
    %v1099 = vmul.f32 %v1088, %v1098
    %v1100 = vsub.f32 1.0, %v1099
    %v1101 = vmul.f32 %v1098, %v1100
    %v1102 = vadd.f32 %v1098, %v1101
    %vm1103 = vweird.f32 %v1088
    %vm1104 = vweird.f32 %v1098
    %vm1105 = vmor %vm1103, %vm1104
    %v1106 = vsel %vm1105, %v1098, %v1102
    %v1107 = vand.u32 2147483647, %v1088
    %vm1108 = vcmp.eq.f32.partialorder %v1107, 8.507059e+37
    %v1109 = vand.u32 %v1088, 2147483648
    %v1110 = vor.u32 1.1754944e-38, %v1109
    %v1111 = vsel %vm1108, %v1110, %v1106
    %v1112 = vrcp.pop %v1091
    %v1113 = vmul.f32 %v1091, %v1112
    %v1114 = vsub.f32 1.0, %v1113
    %v1115 = vmul.f32 %v1112, %v1114
    %v1116 = vadd.f32 %v1112, %v1115
    %vm1117 = vweird.f32 %v1091
    %vm1118 = vweird.f32 %v1112
    %vm1119 = vmor %vm1117, %vm1118
    %v1120 = vsel %vm1119, %v1112, %v1116
    %v1121 = vand.u32 2147483647, %v1091
    %vm1122 = vcmp.eq.f32.partialorder %v1121, 8.507059e+37
    %v1123 = vand.u32 %v1091, 2147483648
    %v1124 = vor.u32 1.1754944e-38, %v1123
    %v1125 = vsel %vm1122, %v1124, %v1120
    %v1126 = vrcp.pop %v1094
    %v1127 = vmul.f32 %v1094, %v1126
    %v1128 = vsub.f32 1.0, %v1127
    %v1129 = vmul.f32 %v1126, %v1128
    %v1130 = vadd.f32 %v1126, %v1129
    %vm1131 = vweird.f32 %v1094
    %vm1132 = vweird.f32 %v1126
    %vm1133 = vmor %vm1131, %vm1132
    %v1134 = vsel %vm1133, %v1126, %v1130
    %v1135 = vand.u32 2147483647, %v1094
    %vm1136 = vcmp.eq.f32.partialorder %v1135, 8.507059e+37
    %v1137 = vand.u32 %v1094, 2147483648
    %v1138 = vor.u32 1.1754944e-38, %v1137
    %v1139 = vsel %vm1136, %v1138, %v1134
    %v1140 = vrcp.pop %v1097
    %v1141 = vmul.f32 %v1097, %v1140
    %v1142 = vsub.f32 1.0, %v1141
    %v1143 = vmul.f32 %v1140, %v1142
    %v1144 = vadd.f32 %v1140, %v1143
    %vm1145 = vweird.f32 %v1097
    %vm1146 = vweird.f32 %v1140
    %vm1147 = vmor %vm1145, %vm1146
    %v1148 = vsel %vm1147, %v1140, %v1144
    %v1149 = vand.u32 2147483647, %v1097
    %vm1150 = vcmp.eq.f32.partialorder %v1149, 8.507059e+37
    %v1151 = vand.u32 %v1097, 2147483648
    %v1152 = vor.u32 1.1754944e-38, %v1151
    %v1153 = vsel %vm1150, %v1152, %v1148
    %v1154 = vmul.f32 %v1079, %v1111
    %v1155 = vmul.f32 %v1081, %v1125
    %v1156 = vmul.f32 %v1083, %v1139
    %v1157 = vmul.f32 %v1085, %v1153
    %v1159 = vsel %vm398, %v1154, 0
    %1161 = vmatpush.msra.mxu0 0.0
    %1162 = vmatpush.msra.mxu0 0.0
    %1163 = vmatpush.msra.mxu0 0.0
    %1164 = vmatpush.msra.mxu0 0.0
    %1165 = vmatpush.msra.mxu0 0.0
    %1166 = vmatpush.msra.mxu0 0.0
    %1167 = vmatpush.msra.mxu0 0.0
    %1168 = vmatpush.msra.mxu0 0.0
    %1169 = vmatpush.msra.mxu0 0.0
    %1170 = vmatpush.msra.mxu0 0.0
    %1171 = vmatpush.msra.mxu0 0.0
    %1172 = vmatpush.msra.mxu0 0.0
    %1173 = vmatpush.msra.mxu0 0.0
    %1174 = vmatpush.msra.mxu0 0.0
    %1175 = vmatpush.msra.mxu0 0.0
    %1176 = vmatpush.msra.mxu0 %v933
    %1177 = vmatmul.f32.gmra.mxu0 %v1159
    %v1178 = vpop.f32.mrf.mxu0
    %v1179 = vadd.f32 0.0, %v1178
    %1180 = vdwg.mxu0
    %v1182 = vsel %vm398, %v1155, 0
    %1184 = vmatpush.msra.mxu0 0.0
    %1185 = vmatpush.msra.mxu0 0.0
    %1186 = vmatpush.msra.mxu0 0.0
    %1187 = vmatpush.msra.mxu0 0.0
    %1188 = vmatpush.msra.mxu0 0.0
    %1189 = vmatpush.msra.mxu0 0.0
    %1190 = vmatpush.msra.mxu0 0.0
    %1191 = vmatpush.msra.mxu0 0.0
    %1192 = vmatpush.msra.mxu0 0.0
    %1193 = vmatpush.msra.mxu0 0.0
    %1194 = vmatpush.msra.mxu0 0.0
    %1195 = vmatpush.msra.mxu0 0.0
    %1196 = vmatpush.msra.mxu0 0.0
    %1197 = vmatpush.msra.mxu0 0.0
    %1198 = vmatpush.msra.mxu0 0.0
    %1199 = vmatpush.msra.mxu0 %v936
    %1200 = vmatmul.f32.gmra.mxu0 %v1182
    %v1201 = vpop.f32.mrf.mxu0
    %v1202 = vadd.f32 0.0, %v1201
    %1203 = vdwg.mxu0
    %v1205 = vsel %vm398, %v1156, 0
    %1207 = vmatpush.msra.mxu0 0.0
    %1208 = vmatpush.msra.mxu0 0.0
    %1209 = vmatpush.msra.mxu0 0.0
    %1210 = vmatpush.msra.mxu0 0.0
    %1211 = vmatpush.msra.mxu0 0.0
    %1212 = vmatpush.msra.mxu0 0.0
    %1213 = vmatpush.msra.mxu0 0.0
    %1214 = vmatpush.msra.mxu0 0.0
    %1215 = vmatpush.msra.mxu0 0.0
    %1216 = vmatpush.msra.mxu0 0.0
    %1217 = vmatpush.msra.mxu0 0.0
    %1218 = vmatpush.msra.mxu0 0.0
    %1219 = vmatpush.msra.mxu0 0.0
    %1220 = vmatpush.msra.mxu0 0.0
    %1221 = vmatpush.msra.mxu0 0.0
    %1222 = vmatpush.msra.mxu0 %v953
    %1223 = vmatmul.f32.gmra.mxu0 %v1205
    %v1224 = vpop.f32.mrf.mxu0
    %v1225 = vadd.f32 0.0, %v1224
    %1226 = vdwg.mxu0
    %v1228 = vsel %vm398, %v1157, 0
    %1230 = vmatpush.msra.mxu0 0.0
    %1231 = vmatpush.msra.mxu0 0.0
    %1232 = vmatpush.msra.mxu0 0.0
    %1233 = vmatpush.msra.mxu0 0.0
    %1234 = vmatpush.msra.mxu0 0.0
    %1235 = vmatpush.msra.mxu0 0.0
    %1236 = vmatpush.msra.mxu0 0.0
    %1237 = vmatpush.msra.mxu0 0.0
    %1238 = vmatpush.msra.mxu0 0.0
    %1239 = vmatpush.msra.mxu0 0.0
    %1240 = vmatpush.msra.mxu0 0.0
    %1241 = vmatpush.msra.mxu0 0.0
    %1242 = vmatpush.msra.mxu0 0.0
    %1243 = vmatpush.msra.mxu0 0.0
    %1244 = vmatpush.msra.mxu0 0.0
    %1245 = vmatpush.msra.mxu0 %v955
    %1246 = vmatmul.f32.gmra.mxu0 %v1228
    %v1247 = vpop.f32.mrf.mxu0
    %v1248 = vadd.f32 0.0, %v1247
    %1249 = vdwg.mxu0
    %1252 = vrot.lane.b32.xlu0 %v1225, 16
    %v1253 = vpop.permute.xlu0 %1252
    %1254 = vrot.lane.b32.xlu0 %v1248, 16
    %v1255 = vpop.permute.xlu0 %1254
    %v1258 = vsel %vm293, %v1179, %v1253
    %v1259 = vsel %vm293, %v1202, %v1255
    %s1260 = scalar_lea.vmem [#allocation2], 224
    %v1261 = vld [vmem:[%s1260] sm:$0xff]
    %v1262 = vld [vmem:[%s1260 + $0x8] sm:$0xff]
    %v1263 = vld [vmem:[%s1260 + $0x10] sm:$0xff]
    %v1264 = vld [vmem:[%s1260 + $0x18] sm:$0xff]
    %v1266 = vsel %vm123, %v1258, 0
    %v1269 = vsel %vm123, %v1259, 0
    %1271 = vmatpush.msra.mxu0 0.0
    %1272 = vmatpush.msra.mxu0 0.0
    %1273 = vmatpush.msra.mxu0 0.0
    %1274 = vmatpush.msra.mxu0 0.0
    %1275 = vmatpush.msra.mxu0 0.0
    %1276 = vmatpush.msra.mxu0 0.0
    %1277 = vmatpush.msra.mxu0 0.0
    %1278 = vmatpush.msra.mxu0 0.0
    %1279 = vmatpush.msra.mxu0 0.0
    %1280 = vmatpush.msra.mxu0 0.0
    %1281 = vmatpush.msra.mxu0 0.0
    %1282 = vmatpush.msra.mxu0 0.0
    %1283 = vmatpush.msra.mxu0 %v1264
    %1284 = vmatpush.msra.mxu0 %v1263
    %1285 = vmatpush.msra.mxu0 %v1262
    %1286 = vmatpush.msra.mxu0 %v1261
    %1287 = vmatmul.f32.gmra.mxu0 %v1266
    %v1288 = vpop.f32.mrf.mxu0
    %v1289 = vadd.f32 0.0, %v1288
    %1290 = vmatmul.f32.gmra.mxu0 %v1269
    %v1291 = vpop.f32.mrf.mxu0
    %v1292 = vadd.f32 0.0, %v1291
    %1293 = vdwg.mxu0
    %v1294 = vadd.f32 %v783, %v1289
    %v1295 = vadd.f32 %v784, %v1292
    %v1296 = vperm.slane %v791, 0
    %v1297 = vadd.f32 %v1294, %v1296
    %v1298 = vadd.f32 %v1295, %v1296
    %v1299 = vsel %vm123, %v1297, 0.0
    %1300 = vadd.xlane.f32.xlu0 %v1299
    %v1301 = vpop.xlane.xlu0 %1300
    %v1302 = vsel %vm123, %v1298, 0.0
    %1303 = vadd.xlane.f32.xlu0 %v1302
    %v1304 = vpop.xlane.xlu0 %1303
    %v1305 = vmul.f32 %v1301, %v136
    %v1306 = vmul.f32 %v1304, %v136
    %v1307 = vsub.f32 %v1297, %v1305
    %v1308 = vsub.f32 %v1298, %v1306
    %v1309 = vmul.f32 %v1307, %v1307
    %v1310 = vmul.f32 %v1308, %v1308
    %v1311 = vsel %vm123, %v1309, 0.0
    %1312 = vadd.xlane.f32.xlu0 %v1311
    %v1313 = vpop.xlane.xlu0 %1312
    %v1314 = vsel %vm123, %v1310, 0.0
    %1315 = vadd.xlane.f32.xlu0 %v1314
    %v1316 = vpop.xlane.xlu0 %1315
    %v1317 = vmul.f32 %v1313, %v136
    %v1318 = vmul.f32 %v1316, %v136
    %v1319 = vadd.f32 %v1317, 1e-05
    %v1320 = vadd.f32 %v1318, 1e-05
    %v1321 = vrsqrt.pop %v1319
    %v1322 = vmul.f32 %v1321, %v1319
    %v1323 = vmul.f32 %v1322, %v1321
    %v1324 = vmul.f32 0.5, %v1323
    %v1325 = vsub.f32 1.5, %v1324
    %v1326 = vmul.f32 %v1321, %v1325
    %vm1327 = vweird.f32 %v1319
    %vm1328 = vweird.f32 %v1321
    %vm1329 = vmor %vm1327, %vm1328
    %v1330 = vsel %vm1329, %v1321, %v1326
    %v1331 = vrsqrt.pop %v1320
    %v1332 = vmul.f32 %v1331, %v1320
    %v1333 = vmul.f32 %v1332, %v1331
    %v1334 = vmul.f32 0.5, %v1333
    %v1335 = vsub.f32 1.5, %v1334
    %v1336 = vmul.f32 %v1331, %v1335
    %vm1337 = vweird.f32 %v1320
    %vm1338 = vweird.f32 %v1331
    %vm1339 = vmor %vm1337, %vm1338
    %v1340 = vsel %vm1339, %v1331, %v1336
    %v1341 = vmul.f32 %v1307, %v1330
    %v1342 = vmul.f32 %v1308, %v1340
    %v1343 = vperm.slane %v792, 0
    %v1344 = vmul.f32 %v1341, %v1343
    %v1345 = vmul.f32 %v1342, %v1343
    %v1346 = vperm.slane %v793, 0
    %v1347 = vadd.f32 %v1344, %v1346
    %v1348 = vadd.f32 %v1345, %v1346
    %s1349 = scalar_lea.vmem [#allocation5], 32
    %v1350 = vld [vmem:[%s1349] sm:$0xff]
    %v1351 = vld [vmem:[%s1349 + $0x8] sm:$0xff]
    %v1352 = vld [vmem:[%s1349 + $0x10] sm:$0xff]
    %v1353 = vld [vmem:[%s1349 + $0x18] sm:$0xff]
    %s1354 = scalar_lea.vmem %s4, 1
    %v1355 = vld [vmem:[%s1354] sm:$0x1]
    %v1357 = vperm.slane %v1355, 0
    %v1360 = vsel %vm123, %v1347, 0
    %v1363 = vsel %vm123, %v1348, 0
    %1365 = vmatpush.msra.mxu0 0.0
    %1366 = vmatpush.msra.mxu0 0.0
    %1367 = vmatpush.msra.mxu0 0.0
    %1368 = vmatpush.msra.mxu0 0.0
    %1369 = vmatpush.msra.mxu0 0.0
    %1370 = vmatpush.msra.mxu0 0.0
    %1371 = vmatpush.msra.mxu0 0.0
    %1372 = vmatpush.msra.mxu0 0.0
    %1373 = vmatpush.msra.mxu0 0.0
    %1374 = vmatpush.msra.mxu0 0.0
    %1375 = vmatpush.msra.mxu0 0.0
    %1376 = vmatpush.msra.mxu0 0.0
    %1377 = vmatpush.msra.mxu0 %v1353
    %1378 = vmatpush.msra.mxu0 %v1352
    %1379 = vmatpush.msra.mxu0 %v1351
    %1380 = vmatpush.msra.mxu0 %v1350
    %1381 = vmatmul.f32.gmra.mxu0 %v1360
    %v1382 = vpop.f32.mrf.mxu0
    %v1383 = vadd.f32 %v1357, %v1382
    %1384 = vmatmul.f32.gmra.mxu0 %v1363
    %v1385 = vpop.f32.mrf.mxu0
    %v1386 = vadd.f32 %v1357, %v1385
    %1387 = vdwg.mxu0
    %v1388 = vmul.f32 %v1383, %v1383
    %v1389 = vmul.f32 %v1386, %v1386
    %v1390 = vmul.f32 %v1383, %v1388
    %v1391 = vmul.f32 %v1386, %v1389
    %v1392 = vmul.f32 %v1390, 0.044715
    %v1393 = vmul.f32 %v1391, 0.044715
    %v1394 = vadd.f32 %v1383, %v1392
    %v1395 = vadd.f32 %v1386, %v1393
    %v1396 = vmul.f32 %v1394, 0.7978846
    %v1397 = vmul.f32 %v1395, 0.7978846
    %v1398 = vtanh.pop %v1396
    %v1399 = vtanh.pop %v1397
    %v1400 = vadd.f32 %v1398, 1.0
    %v1401 = vadd.f32 %v1399, 1.0
    %v1402 = vmul.f32 %v1400, 0.5
    %v1403 = vmul.f32 %v1401, 0.5
    %v1404 = vmul.f32 %v1383, %v1402
    %v1405 = vmul.f32 %v1386, %v1403
    %s1406 = scalar_lea.vmem %s5, 128
    %v1407 = vld [vmem:[%s1406] sm:$0xff]
    %v1408 = vld [vmem:[%s1406 + $0x8] sm:$0xff]
    %v1409 = vld [vmem:[%s1406 + $0x10] sm:$0xff]
    %v1410 = vld [vmem:[%s1406 + $0x18] sm:$0xff]
    %v1411 = vld [vmem:[%s1406 + $0x20] sm:$0xff]
    %v1412 = vld [vmem:[%s1406 + $0x28] sm:$0xff]
    %v1413 = vld [vmem:[%s1406 + $0x30] sm:$0xff]
    %v1414 = vld [vmem:[%s1406 + $0x38] sm:$0xff]
    %v1415 = vld [vmem:[%s1406 + $0x40] sm:$0xff]
    %v1416 = vld [vmem:[%s1406 + $0x48] sm:$0xff]
    %v1417 = vld [vmem:[%s1406 + $0x50] sm:$0xff]
    %v1418 = vld [vmem:[%s1406 + $0x58] sm:$0xff]
    %v1419 = vld [vmem:[%s1406 + $0x60] sm:$0xff]
    %v1420 = vld [vmem:[%s1406 + $0x68] sm:$0xff]
    %v1421 = vld [vmem:[%s1406 + $0x70] sm:$0xff]
    %v1422 = vld [vmem:[%s1406 + $0x78] sm:$0xff]
    %1423 = vmatpush.msra.mxu0 %v1422
    %1424 = vmatpush.msra.mxu0 %v1421
    %1425 = vmatpush.msra.mxu0 %v1420
    %1426 = vmatpush.msra.mxu0 %v1419
    %1427 = vmatpush.msra.mxu0 %v1418
    %1428 = vmatpush.msra.mxu0 %v1417
    %1429 = vmatpush.msra.mxu0 %v1416
    %1430 = vmatpush.msra.mxu0 %v1415
    %1431 = vmatpush.msra.mxu0 %v1414
    %1432 = vmatpush.msra.mxu0 %v1413
    %1433 = vmatpush.msra.mxu0 %v1412
    %1434 = vmatpush.msra.mxu0 %v1411
    %1435 = vmatpush.msra.mxu0 %v1410
    %1436 = vmatpush.msra.mxu0 %v1409
    %1437 = vmatpush.msra.mxu0 %v1408
    %1438 = vmatpush.msra.mxu0 %v1407
    %1439 = vmatmul.f32.gmra.mxu0 %v1404
    %v1440 = vpop.f32.mrf.mxu0
    %v1441 = vadd.f32 0.0, %v1440
    %1442 = vmatmul.f32.gmra.mxu0 %v1405
    %v1443 = vpop.f32.mrf.mxu0
    %v1444 = vadd.f32 0.0, %v1443
    %1445 = vdwg.mxu0
    %v1446 = vadd.f32 %v1297, %v1441
    %v1447 = vadd.f32 %v1298, %v1444
    %v1448 = vperm.slane %v794, 0
    %v1449 = vadd.f32 %v1446, %v1448
    %v1450 = vadd.f32 %v1447, %v1448
    %v1451 = vld [vmem:[%s7] sm:$0x1]
    %v1452 = vld [vmem:[%s7 + $0x1] sm:$0x1]
    %v1453 = vsel %vm123, %v1449, 0.0
    %1454 = vadd.xlane.f32.xlu0 %v1453
    %v1455 = vpop.xlane.xlu0 %1454
    %v1456 = vsel %vm123, %v1450, 0.0
    %1457 = vadd.xlane.f32.xlu0 %v1456
    %v1458 = vpop.xlane.xlu0 %1457
    %v1459 = vmul.f32 %v1455, %v136
    %v1460 = vmul.f32 %v1458, %v136
    %v1461 = vsub.f32 %v1449, %v1459
    %v1462 = vsub.f32 %v1450, %v1460
    %v1463 = vmul.f32 %v1461, %v1461
    %v1464 = vmul.f32 %v1462, %v1462
    %v1465 = vsel %vm123, %v1463, 0.0
    %1466 = vadd.xlane.f32.xlu0 %v1465
    %v1467 = vpop.xlane.xlu0 %1466
    %v1468 = vsel %vm123, %v1464, 0.0
    %1469 = vadd.xlane.f32.xlu0 %v1468
    %v1470 = vpop.xlane.xlu0 %1469
    %v1471 = vmul.f32 %v1467, %v136
    %v1472 = vmul.f32 %v1470, %v136
    %v1473 = vadd.f32 %v1471, 1e-05
    %v1474 = vadd.f32 %v1472, 1e-05
    %v1475 = vrsqrt.pop %v1473
    %v1476 = vmul.f32 %v1475, %v1473
    %v1477 = vmul.f32 %v1476, %v1475
    %v1478 = vmul.f32 0.5, %v1477
    %v1479 = vsub.f32 1.5, %v1478
    %v1480 = vmul.f32 %v1475, %v1479
    %vm1481 = vweird.f32 %v1473
    %vm1482 = vweird.f32 %v1475
    %vm1483 = vmor %vm1481, %vm1482
    %v1484 = vsel %vm1483, %v1475, %v1480
    %v1485 = vrsqrt.pop %v1474
    %v1486 = vmul.f32 %v1485, %v1474
    %v1487 = vmul.f32 %v1486, %v1485
    %v1488 = vmul.f32 0.5, %v1487
    %v1489 = vsub.f32 1.5, %v1488
    %v1490 = vmul.f32 %v1485, %v1489
    %vm1491 = vweird.f32 %v1474
    %vm1492 = vweird.f32 %v1485
    %vm1493 = vmor %vm1491, %vm1492
    %v1494 = vsel %vm1493, %v1485, %v1490
    %v1495 = vmul.f32 %v1461, %v1484
    %v1496 = vmul.f32 %v1462, %v1494
    %v1497 = vperm.slane %v1451, 0
    %v1498 = vmul.f32 %v1495, %v1497
    %v1499 = vmul.f32 %v1496, %v1497
    %v1500 = vperm.slane %v1452, 0
    %v1501 = vadd.f32 %v1498, %v1500
    %v1502 = vadd.f32 %v1499, %v1500
    %v1503 = vrot.slane %v70, 1
    %v1504 = vsel %vm398, %v70, 0
    %1506 = vmatpush.msra.mxu0 0.0
    %1507 = vmatpush.msra.mxu0 0.0
    %1508 = vmatpush.msra.mxu0 0.0
    %1509 = vmatpush.msra.mxu0 0.0
    %1510 = vmatpush.msra.mxu0 0.0
    %1511 = vmatpush.msra.mxu0 0.0
    %1512 = vmatpush.msra.mxu0 0.0
    %1513 = vmatpush.msra.mxu0 0.0
    %1514 = vmatpush.msra.mxu0 0.0
    %1515 = vmatpush.msra.mxu0 0.0
    %1516 = vmatpush.msra.mxu0 0.0
    %1517 = vmatpush.msra.mxu0 0.0
    %1518 = vmatpush.msra.mxu0 0.0
    %1519 = vmatpush.msra.mxu0 0.0
    %1520 = vmatpush.msra.mxu0 0.0
    %1521 = vmatpush.msra.mxu0 %v1501
    %1522 = vmatmul.f32.gmra.mxu0 %v1504
    %v1523 = vpop.f32.mrf.mxu0
    %v1524 = vadd.f32 0.0, %v1523
    %1525 = vdwg.mxu0
    %v1526 = vsel %vm398, %v1503, 0
    %1528 = vmatpush.msra.mxu0 0.0
    %1529 = vmatpush.msra.mxu0 0.0
    %1530 = vmatpush.msra.mxu0 0.0
    %1531 = vmatpush.msra.mxu0 0.0
    %1532 = vmatpush.msra.mxu0 0.0
    %1533 = vmatpush.msra.mxu0 0.0
    %1534 = vmatpush.msra.mxu0 0.0
    %1535 = vmatpush.msra.mxu0 0.0
    %1536 = vmatpush.msra.mxu0 0.0
    %1537 = vmatpush.msra.mxu0 0.0
    %1538 = vmatpush.msra.mxu0 0.0
    %1539 = vmatpush.msra.mxu0 0.0
    %1540 = vmatpush.msra.mxu0 0.0
    %1541 = vmatpush.msra.mxu0 0.0
    %1542 = vmatpush.msra.mxu0 0.0
    %1543 = vmatpush.msra.mxu0 %v1502
    %1544 = vmatmul.f32.gmra.mxu0 %v1526
    %v1545 = vpop.f32.mrf.mxu0
    %v1546 = vadd.f32 0.0, %v1545
    %1547 = vdwg.mxu0
    %vm1548 = vcmask 58368
    %v1549 = vsel %vm1548, %v70, 0.0
    %1550 = vadd.xlane.f32.xlu0 %v1549
    %v1551 = vpop.xlane.xlu0 %1550
    %v1552 = vmax.f32 %v1551, 1e-09
    %v1553 = vrcp.pop %v1552
    %v1554 = vmul.f32 %v1552, %v1553
    %v1555 = vsub.f32 1.0, %v1554
    %v1556 = vmul.f32 %v1553, %v1555
    %v1557 = vadd.f32 %v1553, %v1556
    %vm1558 = vweird.f32 %v1552
    %vm1559 = vweird.f32 %v1553
    %vm1560 = vmor %vm1558, %vm1559
    %v1561 = vsel %vm1560, %v1553, %v1557
    %v1562 = vand.u32 2147483647, %v1552
    %vm1563 = vcmp.eq.f32.partialorder %v1562, 8.507059e+37
    %v1564 = vand.u32 %v1552, 2147483648
    %v1565 = vor.u32 1.1754944e-38, %v1564
    %v1566 = vsel %vm1563, %v1565, %v1561
    %v1568 = vrot.slane %v1566, 1
    %v1571 = vmul.f32 %v1524, %v1566
    %v1572 = vmul.f32 %v1546, %v1568
    %v1573 = vld [vmem:[%s8] sm:$0xff]
    %v1574 = vld [vmem:[%s8 + $0x8] sm:$0xff]
    %v1575 = vld [vmem:[%s8 + $0x10] sm:$0xff]
    %v1576 = vld [vmem:[%s8 + $0x18] sm:$0xff]
    %v1577 = vld [vmem:[%s8 + $0x20] sm:$0xff]
    %v1578 = vld [vmem:[%s8 + $0x28] sm:$0xff]
    %v1579 = vld [vmem:[%s8 + $0x30] sm:$0xff]
    %v1580 = vld [vmem:[%s8 + $0x38] sm:$0xff]
    %s1581 = scalar_lea.vmem %s8, 64
    %v1582 = vld [vmem:[%s1581] ss:$8 sm:$0x3]
    %v1584 = vperm.slane %v1582, 0
    %v1585 = vperm.slane %v1582, 1
    %v1590 = vrot.slane %v1572, 7
    %vm1591 = vcmask 1041409
    %v1592 = vsel %vm1591, %v1590, %v1571
    %v1593 = vsel %vm123, %v1592, 0
    %1595 = vmatpush.msra.mxu0 0.0
    %1596 = vmatpush.msra.mxu0 0.0
    %1597 = vmatpush.msra.mxu0 0.0
    %1598 = vmatpush.msra.mxu0 0.0
    %1599 = vmatpush.msra.mxu0 0.0
    %1600 = vmatpush.msra.mxu0 0.0
    %1601 = vmatpush.msra.mxu0 0.0
    %1602 = vmatpush.msra.mxu0 0.0
    %1603 = vmatpush.msra.mxu0 0.0
    %1604 = vmatpush.msra.mxu0 0.0
    %1605 = vmatpush.msra.mxu0 0.0
    %1606 = vmatpush.msra.mxu0 0.0
    %1607 = vmatpush.msra.mxu0 %v1579
    %1608 = vmatpush.msra.mxu0 %v1577
    %1609 = vmatpush.msra.mxu0 %v1575
    %1610 = vmatpush.msra.mxu0 %v1573
    %1611 = vmatmul.f32.gmra.mxu0 %v1593
    %v1612 = vpop.f32.mrf.mxu0
    %v1613 = vadd.f32 %v1584, %v1612
    %1614 = vdwg.mxu0
    %1615 = vmatpush.msra.mxu0 0.0
    %1616 = vmatpush.msra.mxu0 0.0
    %1617 = vmatpush.msra.mxu0 0.0
    %1618 = vmatpush.msra.mxu0 0.0
    %1619 = vmatpush.msra.mxu0 0.0
    %1620 = vmatpush.msra.mxu0 0.0
    %1621 = vmatpush.msra.mxu0 0.0
    %1622 = vmatpush.msra.mxu0 0.0
    %1623 = vmatpush.msra.mxu0 0.0
    %1624 = vmatpush.msra.mxu0 0.0
    %1625 = vmatpush.msra.mxu0 0.0
    %1626 = vmatpush.msra.mxu0 0.0
    %1627 = vmatpush.msra.mxu0 %v1580
    %1628 = vmatpush.msra.mxu0 %v1578
    %1629 = vmatpush.msra.mxu0 %v1576
    %1630 = vmatpush.msra.mxu0 %v1574
    %1631 = vmatmul.f32.gmra.mxu0 %v1593
    %v1632 = vpop.f32.mrf.mxu0
    %v1633 = vadd.f32 %v1585, %v1632
    %1634 = vdwg.mxu0
    %vm1635 = vcmp.gt.f32.partialorder %v1613, 0.0
    %vm1636 = vcmp.gt.f32.partialorder %v1633, 0.0
    %v1637 = vmul.f32 %v1613, 0.01
    %v1638 = vmul.f32 %v1633, 0.01
    %v1639 = vsel %vm1635, %v1613, %v1637
    %v1640 = vsel %vm1636, %v1633, %v1638
    %v1641 = vld [vmem:[%s9] sm:$0xff]
    %v1642 = vld [vmem:[%s9 + $0x8] sm:$0xff]
    %v1643 = vld [vmem:[%s9 + $0x10] sm:$0xff]
    %v1644 = vld [vmem:[%s9 + $0x18] sm:$0xff]
    %v1645 = vld [vmem:[%s9 + $0x20] sm:$0xff]
    %v1646 = vld [vmem:[%s9 + $0x28] sm:$0xff]
    %v1647 = vld [vmem:[%s9 + $0x30] sm:$0xff]
    %v1648 = vld [vmem:[%s9 + $0x38] sm:$0xff]
    %v1649 = vld [vmem:[%s9 + $0x40] sm:$0xff]
    %v1650 = vld [vmem:[%s9 + $0x48] sm:$0xff]
    %v1651 = vld [vmem:[%s9 + $0x50] sm:$0xff]
    %v1652 = vld [vmem:[%s9 + $0x58] sm:$0xff]
    %v1653 = vld [vmem:[%s9 + $0x60] sm:$0xff]
    %v1654 = vld [vmem:[%s9 + $0x68] sm:$0xff]
    %v1655 = vld [vmem:[%s9 + $0x70] sm:$0xff]
    %v1656 = vld [vmem:[%s9 + $0x78] sm:$0xff]
    %v1657 = vld [vmem:[%s9 + $0x80] sm:$0xff]
    %v1658 = vld [vmem:[%s9 + $0x88] sm:$0xff]
    %v1659 = vld [vmem:[%s9 + $0x90] sm:$0xff]
    %v1660 = vld [vmem:[%s9 + $0x98] sm:$0xff]
    %v1661 = vld [vmem:[%s9 + $0xa0] sm:$0xff]
    %v1662 = vld [vmem:[%s9 + $0xa8] sm:$0xff]
    %v1663 = vld [vmem:[%s9 + $0xb0] sm:$0xff]
    %v1664 = vld [vmem:[%s9 + $0xb8] sm:$0xff]
    %v1665 = vld [vmem:[%s9 + $0xc0] sm:$0xff]
    %v1666 = vld [vmem:[%s9 + $0xc8] sm:$0xff]
    %v1667 = vld [vmem:[%s9 + $0xd0] sm:$0xff]
    %v1668 = vld [vmem:[%s9 + $0xd8] sm:$0xff]
    %v1669 = vld [vmem:[%s9 + $0xe0] sm:$0xff]
    %v1670 = vld [vmem:[%s9 + $0xe8] sm:$0xff]
    %v1671 = vld [vmem:[%s9 + $0xf0] sm:$0xff]
    %v1672 = vld [vmem:[%s9 + $0xf8] sm:$0xff]
    %v1673 = vld [vmem:[%s9 + $0x100] sm:$0x1]
    %v1674 = vperm.slane %v1673, 0
    %1675 = vmatpush.msra.mxu0 %v1656
    %1676 = vmatpush.msra.mxu0 %v1655
    %1677 = vmatpush.msra.mxu0 %v1654
    %1678 = vmatpush.msra.mxu0 %v1653
    %1679 = vmatpush.msra.mxu0 %v1652
    %1680 = vmatpush.msra.mxu0 %v1651
    %1681 = vmatpush.msra.mxu0 %v1650
    %1682 = vmatpush.msra.mxu0 %v1649
    %1683 = vmatpush.msra.mxu0 %v1648
    %1684 = vmatpush.msra.mxu0 %v1647
    %1685 = vmatpush.msra.mxu0 %v1646
    %1686 = vmatpush.msra.mxu0 %v1645
    %1687 = vmatpush.msra.mxu0 %v1644
    %1688 = vmatpush.msra.mxu0 %v1643
    %1689 = vmatpush.msra.mxu0 %v1642
    %1690 = vmatpush.msra.mxu0 %v1641
    %1691 = vmatmul.f32.gmra.mxu0 %v1639
    %v1692 = vpop.f32.mrf.mxu0
    %v1693 = vadd.f32 %v1674, %v1692
    %1694 = vdwg.mxu0
    %1695 = vmatpush.msra.mxu0 %v1672
    %1696 = vmatpush.msra.mxu0 %v1671
    %1697 = vmatpush.msra.mxu0 %v1670
    %1698 = vmatpush.msra.mxu0 %v1669
    %1699 = vmatpush.msra.mxu0 %v1668
    %1700 = vmatpush.msra.mxu0 %v1667
    %1701 = vmatpush.msra.mxu0 %v1666
    %1702 = vmatpush.msra.mxu0 %v1665
    %1703 = vmatpush.msra.mxu0 %v1664
    %1704 = vmatpush.msra.mxu0 %v1663
    %1705 = vmatpush.msra.mxu0 %v1662
    %1706 = vmatpush.msra.mxu0 %v1661
    %1707 = vmatpush.msra.mxu0 %v1660
    %1708 = vmatpush.msra.mxu0 %v1659
    %1709 = vmatpush.msra.mxu0 %v1658
    %1710 = vmatpush.msra.mxu0 %v1657
    %1711 = vmatmul.f32.gmra.mxu0 %v1640
    %v1712 = vpop.f32.mrf.mxu0
    %v1713 = vadd.f32 %v1693, %v1712
    %1714 = vdwg.mxu0
    %1715 = vst [vmem:[#allocation7] sm:$0x3] %v1713
    // Predicated region
    $region50: #{tpu_custom_call.1} parent=1 // pred_check
      _
    $region51: #{tpu_custom_call.1} parent=1 // pred_check_branch
      %1717 = sbr.rel (0) target = $region53
    $region52: #{tpu_custom_call.1} parent=1 // pred_region
      %1719 = vsyncadd [#allocation4], 0
      %s1721 = sshll.u32 [#allocation7], 4
      %s1722 = int_to_ptr.vmem [resolvable:$true] %s1721
      %s1723 = sshll.u32 %s10, 4
      %s1724 = int_to_ptr.hbm [resolvable:$true] %s1723
      %1726 = dma.vmem_to_hbm [thread:$0]  %s1722, 32, %s1724, [#allocation4]
    $region53: #{tpu_custom_call.1} parent=1 // pred_fallthru
      _
    // Predicated region
    $region54: #{tpu_custom_call.1} parent=1 // pred_check
      _
    $region55: #{tpu_custom_call.1} parent=1 // pred_check_branch
      %1728 = sbr.rel (0) target = $region57
    $region56: #{tpu_custom_call.1} parent=1 // pred_region
      %1730 = dma.done [#allocation4], 32
    $region57: #{tpu_custom_call.1} parent=1 // pred_fallthru
      _
    %1731 = vsyncpa [#allocation3], 1
    %1732 = vsyncpa [#allocation6], 1
    %1733 = vsyncpa [#allocation4], 1

</llo_original>
